<compile_context>
chip_gen: v7x
topology: tpu7x:2x2x1
jax: 0.10.0
libtpu: 0.0.40
codegen_flags: <defaults>
</compile_context>

<pallas_src>
import functools

import numpy as np
import jax
import jax.numpy as jnp
from jax.experimental import pallas as pl
from jax.experimental.pallas import tpu as pltpu

# Deterministic parameters from Laplacian_Loss.__init__
_K1 = [0.05, 0.25, 0.4, 0.25, 0.05]                      # separable Gaussian taps
_K2D = np.outer(np.array(_K1, np.float32), np.array(_K1, np.float32))
_EPS = 1e-3                                              # CharbonnierLoss eps

_TEMPS = 12   # conservative count of full-size f32 temporaries live in-kernel


# ---------------------------------------------------------------------------
# Fused kernel: per block of channels, compute lap(x) - lap(y) and a lane-wide
# Charbonnier partial sum, entirely in VMEM / registers (no scratch buffers).
# ---------------------------------------------------------------------------
def _lap_charb_kernel(x_ref, y_ref, o_ref, *, eps):
    _, H, W = x_ref.shape
    f32 = jnp.float32
    w0, w1, w2 = f32(_K1[2]), f32(_K1[1]), f32(_K1[0])   # 0.4, 0.25, 0.05

    # Even-pixel x4 mask (laplacian_kernel's "zero, then ::2 <- down*4") at
    # (1, H, W); broadcast over the channel-block dim in the multiply.
    ii = jax.lax.broadcasted_iota(jnp.int32, (1, H, W), 1)
    jj = jax.lax.broadcasted_iota(jnp.int32, (1, H, W), 2)
    mask4 = jnp.where(((ii & 1) == 0) & ((jj & 1) == 0), f32(4.0), f32(0.0))

    def shift_rep(a, s, axis):
        # b[..., i, ...] = a[..., clamp(i + s, 0, n-1), ...] along `axis`
        # (replicate padding folded into the shift; stays at width/height n).
        n = a.shape[axis]
        sl = [slice(None)] * a.ndim
        ed = [slice(None)] * a.ndim
        if s > 0:
            sl[axis] = slice(s, n)
            ed[axis] = slice(n - 1, n)
            parts = [a[tuple(sl)]] + [a[tuple(ed)]] * s
        else:
            sl[axis] = slice(0, n + s)
            ed[axis] = slice(0, 1)
            parts = [a[tuple(ed)]] * (-s) + [a[tuple(sl)]]
        return jnp.concatenate(parts, axis=axis)

    def conv5(a, axis):
        # Symmetric 5-tap [0.05, 0.25, 0.4, 0.25, 0.05] with replicate padding:
        # only 3 multiplies thanks to tap symmetry.
        p1 = shift_rep(a, 1, axis) + shift_rep(a, -1, axis)
        p2 = shift_rep(a, 2, axis) + shift_rep(a, -2, axis)
        return w0 * a + w1 * p1 + w2 * p2

    def conv_gauss(a):
        return conv5(conv5(a, 1), 2)          # separable 5x5 Gaussian

    def lap(a):
        # current - conv_gauss(mask4 * conv_gauss(current))
        return a - conv_gauss(conv_gauss(a) * mask4)

    d = lap(x_ref[...].astype(f32)) - lap(y_ref[...].astype(f32))
    ch = jnp.sqrt(d * d + f32(eps * eps))
    # Lane-wide partial sum for this grid step (reduced over channel + row dims).
    o_ref[...] = jnp.sum(ch, axis=(0, 1), keepdims=True)


# ---------------------------------------------------------------------------
# Wrapper
# ---------------------------------------------------------------------------
def _round_up(v, m):
    return -(-v // m) * m


def _vmem_capacity_bytes():
    try:
        return int(pltpu.get_tpu_info().vmem_capacity_bytes)
    except Exception:
        return 64 << 20            # conservative fallback (v7x-sized VMEM)


def _channel_block(nc, h, w, in_itemsize, budget_bytes):
    """Largest channel-block B whose lane/sublane-padded working set fits budget."""
    hp = _round_up(h, 8)           # sublane padding
    wp = _round_up(w, 128)         # lane padding
    per_ch = (2 * 2 * hp * wp * in_itemsize    # x & y blocks, double-buffered
              + _TEMPS * hp * wp * 4)          # in-kernel f32 temporaries
    return max(1, min(nc, budget_bytes // per_ch))


@functools.partial(jax.jit, static_argnames=("block_channels",))
def laplacian_loss(x, y, *, block_channels=None):
    N, C, H, W = x.shape
    NC = N * C
    x2 = x.reshape(NC, H, W)
    y2 = y.reshape(NC, H, W)

    cap = _vmem_capacity_bytes()
    budget = (cap * 9) // 16       # ~72 MiB on 128 MiB parts, ~36 MiB on v7x
    if block_channels is None:
        B = _channel_block(NC, H, W, x2.dtype.itemsize, budget)
    else:
        B = max(1, min(int(block_channels), NC))
    G = int(pl.cdiv(NC, B))
    pad = G * B - NC
    if pad:
        # Pad BOTH inputs with identical zero channels: their Laplacian diff is
        # exactly 0, so each padded element contributes sqrt(eps^2) to the sum,
        # which is subtracted exactly below.
        x2 = jnp.pad(x2, ((0, pad), (0, 0), (0, 0)))
        y2 = jnp.pad(y2, ((0, pad), (0, 0), (0, 0)))

    partials = pl.pallas_call(
        functools.partial(_lap_charb_kernel, eps=_EPS),
        out_shape=jax.ShapeDtypeStruct((G, 1, W), jnp.float32),
        grid=(G,),
        in_specs=[
            pl.BlockSpec((B, H, W), lambda i: (i, 0, 0)),
            pl.BlockSpec((B, H, W), lambda i: (i, 0, 0)),
        ],
        out_specs=pl.BlockSpec((1, 1, W), lambda i: (i, 0, 0)),
        compiler_params=pltpu.CompilerParams(
            dimension_semantics=("parallel",),
            vmem_limit_bytes=int(min(cap - (8 << 20), (cap * 9) // 10)),
        ),
    )(x2, y2)

    total = jnp.sum(partials)
    if pad:
        total = total - jnp.float32(pad * H * W) * jnp.sqrt(jnp.float32(_EPS * _EPS))
    return total / jnp.float32(NC * H * W)


# ---------------------------------------------------------------------------
# Pure-JAX reference (correctness check)
# ---------------------------------------------------------------------------
def _ref_loss(x, y):
    k = jnp.asarray(_K2D)

    def conv_gauss(img):
        N, C, H, W = img.shape
        p = jnp.pad(img, ((0, 0), (0, 0), (2, 2), (2, 2)), mode="edge")
        out = jnp.zeros_like(img)
        for di in range(5):
            for dj in range(5):
                out = out + k[di, dj] * p[:, :, di:di + H, dj:dj + W]
        return out

    def lap(img):
        N, C, H, W = img.shape
        f = conv_gauss(img)
        ii = jnp.arange(H)[:, None]
        jj = jnp.arange(W)[None, :]
        mask4 = jnp.where((ii % 2 == 0) & (jj % 2 == 0), 4.0, 0.0)
        nf = f * mask4[None, None, :, :]
        return img - conv_gauss(nf)

    d = lap(x) - lap(y)
    return jnp.mean(jnp.sqrt(d * d + _EPS * _EPS))


if __name__ == "__main__":
    key = jax.random.PRNGKey(0)
    cases = [
        ((2, 3, 16, 16), None),     # tiny smoke test
        ((2, 3, 64, 128), None),    # lane-aligned width
        ((1, 3, 36, 200), 2),       # unaligned width + forced small block:
                                    # multi-step grid + tail padding path
    ]
    for idx, (shape, bc) in enumerate(cases):
        kx, ky = jax.random.split(jax.random.fold_in(key, idx))
        x = jax.random.normal(kx, shape, dtype=jnp.float32)
        y = jax.random.normal(ky, shape, dtype=jnp.float32)
        out = laplacian_loss(x, y, block_channels=bc)
        jax.block_until_ready(out)
        ref = _ref_loss(x, y)
        assert np.allclose(np.asarray(out), np.asarray(ref), rtol=1e-5, atol=1e-5), (
            shape, float(out), float(ref))
    print("KERNEL_OK")
</pallas_src>

<mosaic_0001>
module attributes {stable_mosaic.version = 11 : i64} {
  func.func @_lap_charb_kernel(%arg0: i32, %arg1: memref<6x16x16xf32, #tpu.memory_space<vmem>>, %arg2: memref<6x16x16xf32, #tpu.memory_space<vmem>>, %arg3: memref<1x1x16xf32, #tpu.memory_space<vmem>>) attributes {dimension_semantics = [#tpu.dimension_semantics<parallel>], iteration_bounds = array<i64: 1>, scalar_prefetch = 0 : i64, scratch_operands = 0 : i64, tpu.core_type = #tpu.core_type<tc>, window_params = [{transform_indices = @transform_0, window_bounds = array<i64: 6, 16, 16>}, {transform_indices = @transform_1, window_bounds = array<i64: 6, 16, 16>}, {transform_indices = @transform_2, window_bounds = array<i64: 1, 1, 16>}]} {
    %0 = tpu.iota {dimensions = array<i32: 1>} : vector<1x16x16xi32>
    %1 = tpu.iota {dimensions = array<i32: 2>} : vector<1x16x16xi32>
    %c1_i32 = arith.constant 1 : i32
    %2 = vector.broadcast %c1_i32 : i32 to vector<1x16x16xi32>
    %3 = arith.andi %0, %2 : vector<1x16x16xi32>
    %c0_i32 = arith.constant 0 : i32
    %4 = vector.broadcast %c0_i32 : i32 to vector<1x16x16xi32>
    %5 = arith.cmpi eq, %3, %4 : vector<1x16x16xi32>
    %c1_i32_0 = arith.constant 1 : i32
    %6 = vector.broadcast %c1_i32_0 : i32 to vector<1x16x16xi32>
    %7 = arith.andi %1, %6 : vector<1x16x16xi32>
    %c0_i32_1 = arith.constant 0 : i32
    %8 = vector.broadcast %c0_i32_1 : i32 to vector<1x16x16xi32>
    %9 = arith.cmpi eq, %7, %8 : vector<1x16x16xi32>
    %10 = arith.andi %5, %9 : vector<1x16x16xi1>
    %cst = arith.constant 4.000000e+00 : f32
    %cst_2 = arith.constant 0.000000e+00 : f32
    %11 = vector.broadcast %cst : f32 to vector<1x16x16xf32>
    %12 = vector.broadcast %cst_2 : f32 to vector<1x16x16xf32>
    %13 = arith.select %10, %11, %12 : vector<1x16x16xi1>, vector<1x16x16xf32>
    %c0 = arith.constant 0 : index
    %c0_3 = arith.constant 0 : index
    %c0_4 = arith.constant 0 : index
    %14 = vector.load %arg1[%c0, %c0_3, %c0_4] : memref<6x16x16xf32, #tpu.memory_space<vmem>>, vector<6x16x16xf32>
    %15 = vector.extract_strided_slice %14 {offsets = [0, 1, 0], sizes = [6, 15, 16], strides = [1, 1, 1]} : vector<6x16x16xf32> to vector<6x15x16xf32>
    %16 = vector.extract_strided_slice %14 {offsets = [0, 15, 0], sizes = [6, 1, 16], strides = [1, 1, 1]} : vector<6x16x16xf32> to vector<6x1x16xf32>
    %17 = tpu.concatenate %15, %16 in 1 : vector<6x15x16xf32>, vector<6x1x16xf32> -> vector<6x16x16xf32>
    %18 = vector.extract_strided_slice %14 {offsets = [0, 0, 0], sizes = [6, 1, 16], strides = [1, 1, 1]} : vector<6x16x16xf32> to vector<6x1x16xf32>
    %19 = vector.extract_strided_slice %14 {offsets = [0, 0, 0], sizes = [6, 15, 16], strides = [1, 1, 1]} : vector<6x16x16xf32> to vector<6x15x16xf32>
    %20 = tpu.concatenate %18, %19 in 1 : vector<6x1x16xf32>, vector<6x15x16xf32> -> vector<6x16x16xf32>
    %21 = arith.addf %17, %20 : vector<6x16x16xf32>
    %22 = vector.extract_strided_slice %14 {offsets = [0, 2, 0], sizes = [6, 14, 16], strides = [1, 1, 1]} : vector<6x16x16xf32> to vector<6x14x16xf32>
    %23 = vector.extract_strided_slice %14 {offsets = [0, 15, 0], sizes = [6, 1, 16], strides = [1, 1, 1]} : vector<6x16x16xf32> to vector<6x1x16xf32>
    %24 = tpu.concatenate %22, %23, %23 in 1 : vector<6x14x16xf32>, vector<6x1x16xf32>, vector<6x1x16xf32> -> vector<6x16x16xf32>
    %25 = vector.extract_strided_slice %14 {offsets = [0, 0, 0], sizes = [6, 1, 16], strides = [1, 1, 1]} : vector<6x16x16xf32> to vector<6x1x16xf32>
    %26 = vector.extract_strided_slice %14 {offsets = [0, 0, 0], sizes = [6, 14, 16], strides = [1, 1, 1]} : vector<6x16x16xf32> to vector<6x14x16xf32>
    %27 = tpu.concatenate %25, %25, %26 in 1 : vector<6x1x16xf32>, vector<6x1x16xf32>, vector<6x14x16xf32> -> vector<6x16x16xf32>
    %28 = arith.addf %24, %27 : vector<6x16x16xf32>
    %cst_5 = arith.constant 4.000000e-01 : f32
    %29 = vector.broadcast %cst_5 : f32 to vector<6x16x16xf32>
    %30 = arith.mulf %29, %14 : vector<6x16x16xf32>
    %cst_6 = arith.constant 2.500000e-01 : f32
    %31 = vector.broadcast %cst_6 : f32 to vector<6x16x16xf32>
    %32 = arith.mulf %31, %21 : vector<6x16x16xf32>
    %33 = arith.addf %30, %32 : vector<6x16x16xf32>
    %cst_7 = arith.constant 5.000000e-02 : f32
    %34 = vector.broadcast %cst_7 : f32 to vector<6x16x16xf32>
    %35 = arith.mulf %34, %28 : vector<6x16x16xf32>
    %36 = arith.addf %33, %35 : vector<6x16x16xf32>
    %37 = vector.extract_strided_slice %36 {offsets = [0, 0, 1], sizes = [6, 16, 15], strides = [1, 1, 1]} : vector<6x16x16xf32> to vector<6x16x15xf32>
    %38 = vector.extract_strided_slice %36 {offsets = [0, 0, 15], sizes = [6, 16, 1], strides = [1, 1, 1]} : vector<6x16x16xf32> to vector<6x16x1xf32>
    %39 = tpu.concatenate %37, %38 in 2 : vector<6x16x15xf32>, vector<6x16x1xf32> -> vector<6x16x16xf32>
    %40 = vector.extract_strided_slice %36 {offsets = [0, 0, 0], sizes = [6, 16, 1], strides = [1, 1, 1]} : vector<6x16x16xf32> to vector<6x16x1xf32>
    %41 = vector.extract_strided_slice %36 {offsets = [0, 0, 0], sizes = [6, 16, 15], strides = [1, 1, 1]} : vector<6x16x16xf32> to vector<6x16x15xf32>
    %42 = tpu.concatenate %40, %41 in 2 : vector<6x16x1xf32>, vector<6x16x15xf32> -> vector<6x16x16xf32>
    %43 = arith.addf %39, %42 : vector<6x16x16xf32>
    %44 = vector.extract_strided_slice %36 {offsets = [0, 0, 2], sizes = [6, 16, 14], strides = [1, 1, 1]} : vector<6x16x16xf32> to vector<6x16x14xf32>
    %45 = vector.extract_strided_slice %36 {offsets = [0, 0, 15], sizes = [6, 16, 1], strides = [1, 1, 1]} : vector<6x16x16xf32> to vector<6x16x1xf32>
    %46 = tpu.concatenate %44, %45, %45 in 2 : vector<6x16x14xf32>, vector<6x16x1xf32>, vector<6x16x1xf32> -> vector<6x16x16xf32>
    %47 = vector.extract_strided_slice %36 {offsets = [0, 0, 0], sizes = [6, 16, 1], strides = [1, 1, 1]} : vector<6x16x16xf32> to vector<6x16x1xf32>
    %48 = vector.extract_strided_slice %36 {offsets = [0, 0, 0], sizes = [6, 16, 14], strides = [1, 1, 1]} : vector<6x16x16xf32> to vector<6x16x14xf32>
    %49 = tpu.concatenate %47, %47, %48 in 2 : vector<6x16x1xf32>, vector<6x16x1xf32>, vector<6x16x14xf32> -> vector<6x16x16xf32>
    %50 = arith.addf %46, %49 : vector<6x16x16xf32>
    %cst_8 = arith.constant 4.000000e-01 : f32
    %51 = vector.broadcast %cst_8 : f32 to vector<6x16x16xf32>
    %52 = arith.mulf %51, %36 : vector<6x16x16xf32>
    %cst_9 = arith.constant 2.500000e-01 : f32
    %53 = vector.broadcast %cst_9 : f32 to vector<6x16x16xf32>
    %54 = arith.mulf %53, %43 : vector<6x16x16xf32>
    %55 = arith.addf %52, %54 : vector<6x16x16xf32>
    %cst_10 = arith.constant 5.000000e-02 : f32
    %56 = vector.broadcast %cst_10 : f32 to vector<6x16x16xf32>
    %57 = arith.mulf %56, %50 : vector<6x16x16xf32>
    %58 = arith.addf %55, %57 : vector<6x16x16xf32>
    %59 = vector.broadcast %13 : vector<1x16x16xf32> to vector<6x16x16xf32>
    %60 = arith.mulf %58, %59 : vector<6x16x16xf32>
    %61 = vector.extract_strided_slice %60 {offsets = [0, 1, 0], sizes = [6, 15, 16], strides = [1, 1, 1]} : vector<6x16x16xf32> to vector<6x15x16xf32>
    %62 = vector.extract_strided_slice %60 {offsets = [0, 15, 0], sizes = [6, 1, 16], strides = [1, 1, 1]} : vector<6x16x16xf32> to vector<6x1x16xf32>
    %63 = tpu.concatenate %61, %62 in 1 : vector<6x15x16xf32>, vector<6x1x16xf32> -> vector<6x16x16xf32>
    %64 = vector.extract_strided_slice %60 {offsets = [0, 0, 0], sizes = [6, 1, 16], strides = [1, 1, 1]} : vector<6x16x16xf32> to vector<6x1x16xf32>
    %65 = vector.extract_strided_slice %60 {offsets = [0, 0, 0], sizes = [6, 15, 16], strides = [1, 1, 1]} : vector<6x16x16xf32> to vector<6x15x16xf32>
    %66 = tpu.concatenate %64, %65 in 1 : vector<6x1x16xf32>, vector<6x15x16xf32> -> vector<6x16x16xf32>
    %67 = arith.addf %63, %66 : vector<6x16x16xf32>
    %68 = vector.extract_strided_slice %60 {offsets = [0, 2, 0], sizes = [6, 14, 16], strides = [1, 1, 1]} : vector<6x16x16xf32> to vector<6x14x16xf32>
    %69 = vector.extract_strided_slice %60 {offsets = [0, 15, 0], sizes = [6, 1, 16], strides = [1, 1, 1]} : vector<6x16x16xf32> to vector<6x1x16xf32>
    %70 = tpu.concatenate %68, %69, %69 in 1 : vector<6x14x16xf32>, vector<6x1x16xf32>, vector<6x1x16xf32> -> vector<6x16x16xf32>
    %71 = vector.extract_strided_slice %60 {offsets = [0, 0, 0], sizes = [6, 1, 16], strides = [1, 1, 1]} : vector<6x16x16xf32> to vector<6x1x16xf32>
    %72 = vector.extract_strided_slice %60 {offsets = [0, 0, 0], sizes = [6, 14, 16], strides = [1, 1, 1]} : vector<6x16x16xf32> to vector<6x14x16xf32>
    %73 = tpu.concatenate %71, %71, %72 in 1 : vector<6x1x16xf32>, vector<6x1x16xf32>, vector<6x14x16xf32> -> vector<6x16x16xf32>
    %74 = arith.addf %70, %73 : vector<6x16x16xf32>
    %cst_11 = arith.constant 4.000000e-01 : f32
    %75 = vector.broadcast %cst_11 : f32 to vector<6x16x16xf32>
    %76 = arith.mulf %75, %60 : vector<6x16x16xf32>
    %cst_12 = arith.constant 2.500000e-01 : f32
    %77 = vector.broadcast %cst_12 : f32 to vector<6x16x16xf32>
    %78 = arith.mulf %77, %67 : vector<6x16x16xf32>
    %79 = arith.addf %76, %78 : vector<6x16x16xf32>
    %cst_13 = arith.constant 5.000000e-02 : f32
    %80 = vector.broadcast %cst_13 : f32 to vector<6x16x16xf32>
    %81 = arith.mulf %80, %74 : vector<6x16x16xf32>
    %82 = arith.addf %79, %81 : vector<6x16x16xf32>
    %83 = vector.extract_strided_slice %82 {offsets = [0, 0, 1], sizes = [6, 16, 15], strides = [1, 1, 1]} : vector<6x16x16xf32> to vector<6x16x15xf32>
    %84 = vector.extract_strided_slice %82 {offsets = [0, 0, 15], sizes = [6, 16, 1], strides = [1, 1, 1]} : vector<6x16x16xf32> to vector<6x16x1xf32>
    %85 = tpu.concatenate %83, %84 in 2 : vector<6x16x15xf32>, vector<6x16x1xf32> -> vector<6x16x16xf32>
    %86 = vector.extract_strided_slice %82 {offsets = [0, 0, 0], sizes = [6, 16, 1], strides = [1, 1, 1]} : vector<6x16x16xf32> to vector<6x16x1xf32>
    %87 = vector.extract_strided_slice %82 {offsets = [0, 0, 0], sizes = [6, 16, 15], strides = [1, 1, 1]} : vector<6x16x16xf32> to vector<6x16x15xf32>
    %88 = tpu.concatenate %86, %87 in 2 : vector<6x16x1xf32>, vector<6x16x15xf32> -> vector<6x16x16xf32>
    %89 = arith.addf %85, %88 : vector<6x16x16xf32>
    %90 = vector.extract_strided_slice %82 {offsets = [0, 0, 2], sizes = [6, 16, 14], strides = [1, 1, 1]} : vector<6x16x16xf32> to vector<6x16x14xf32>
    %91 = vector.extract_strided_slice %82 {offsets = [0, 0, 15], sizes = [6, 16, 1], strides = [1, 1, 1]} : vector<6x16x16xf32> to vector<6x16x1xf32>
    %92 = tpu.concatenate %90, %91, %91 in 2 : vector<6x16x14xf32>, vector<6x16x1xf32>, vector<6x16x1xf32> -> vector<6x16x16xf32>
    %93 = vector.extract_strided_slice %82 {offsets = [0, 0, 0], sizes = [6, 16, 1], strides = [1, 1, 1]} : vector<6x16x16xf32> to vector<6x16x1xf32>
    %94 = vector.extract_strided_slice %82 {offsets = [0, 0, 0], sizes = [6, 16, 14], strides = [1, 1, 1]} : vector<6x16x16xf32> to vector<6x16x14xf32>
    %95 = tpu.concatenate %93, %93, %94 in 2 : vector<6x16x1xf32>, vector<6x16x1xf32>, vector<6x16x14xf32> -> vector<6x16x16xf32>
    %96 = arith.addf %92, %95 : vector<6x16x16xf32>
    %cst_14 = arith.constant 4.000000e-01 : f32
    %97 = vector.broadcast %cst_14 : f32 to vector<6x16x16xf32>
    %98 = arith.mulf %97, %82 : vector<6x16x16xf32>
    %cst_15 = arith.constant 2.500000e-01 : f32
    %99 = vector.broadcast %cst_15 : f32 to vector<6x16x16xf32>
    %100 = arith.mulf %99, %89 : vector<6x16x16xf32>
    %101 = arith.addf %98, %100 : vector<6x16x16xf32>
    %cst_16 = arith.constant 5.000000e-02 : f32
    %102 = vector.broadcast %cst_16 : f32 to vector<6x16x16xf32>
    %103 = arith.mulf %102, %96 : vector<6x16x16xf32>
    %104 = arith.addf %101, %103 : vector<6x16x16xf32>
    %105 = arith.subf %14, %104 : vector<6x16x16xf32>
    %c0_17 = arith.constant 0 : index
    %c0_18 = arith.constant 0 : index
    %c0_19 = arith.constant 0 : index
    %106 = vector.load %arg2[%c0_17, %c0_18, %c0_19] : memref<6x16x16xf32, #tpu.memory_space<vmem>>, vector<6x16x16xf32>
    %107 = vector.extract_strided_slice %106 {offsets = [0, 1, 0], sizes = [6, 15, 16], strides = [1, 1, 1]} : vector<6x16x16xf32> to vector<6x15x16xf32>
    %108 = vector.extract_strided_slice %106 {offsets = [0, 15, 0], sizes = [6, 1, 16], strides = [1, 1, 1]} : vector<6x16x16xf32> to vector<6x1x16xf32>
    %109 = tpu.concatenate %107, %108 in 1 : vector<6x15x16xf32>, vector<6x1x16xf32> -> vector<6x16x16xf32>
    %110 = vector.extract_strided_slice %106 {offsets = [0, 0, 0], sizes = [6, 1, 16], strides = [1, 1, 1]} : vector<6x16x16xf32> to vector<6x1x16xf32>
    %111 = vector.extract_strided_slice %106 {offsets = [0, 0, 0], sizes = [6, 15, 16], strides = [1, 1, 1]} : vector<6x16x16xf32> to vector<6x15x16xf32>
    %112 = tpu.concatenate %110, %111 in 1 : vector<6x1x16xf32>, vector<6x15x16xf32> -> vector<6x16x16xf32>
    %113 = arith.addf %109, %112 : vector<6x16x16xf32>
    %114 = vector.extract_strided_slice %106 {offsets = [0, 2, 0], sizes = [6, 14, 16], strides = [1, 1, 1]} : vector<6x16x16xf32> to vector<6x14x16xf32>
    %115 = vector.extract_strided_slice %106 {offsets = [0, 15, 0], sizes = [6, 1, 16], strides = [1, 1, 1]} : vector<6x16x16xf32> to vector<6x1x16xf32>
    %116 = tpu.concatenate %114, %115, %115 in 1 : vector<6x14x16xf32>, vector<6x1x16xf32>, vector<6x1x16xf32> -> vector<6x16x16xf32>
    %117 = vector.extract_strided_slice %106 {offsets = [0, 0, 0], sizes = [6, 1, 16], strides = [1, 1, 1]} : vector<6x16x16xf32> to vector<6x1x16xf32>
    %118 = vector.extract_strided_slice %106 {offsets = [0, 0, 0], sizes = [6, 14, 16], strides = [1, 1, 1]} : vector<6x16x16xf32> to vector<6x14x16xf32>
    %119 = tpu.concatenate %117, %117, %118 in 1 : vector<6x1x16xf32>, vector<6x1x16xf32>, vector<6x14x16xf32> -> vector<6x16x16xf32>
    %120 = arith.addf %116, %119 : vector<6x16x16xf32>
    %cst_20 = arith.constant 4.000000e-01 : f32
    %121 = vector.broadcast %cst_20 : f32 to vector<6x16x16xf32>
    %122 = arith.mulf %121, %106 : vector<6x16x16xf32>
    %cst_21 = arith.constant 2.500000e-01 : f32
    %123 = vector.broadcast %cst_21 : f32 to vector<6x16x16xf32>
    %124 = arith.mulf %123, %113 : vector<6x16x16xf32>
    %125 = arith.addf %122, %124 : vector<6x16x16xf32>
    %cst_22 = arith.constant 5.000000e-02 : f32
    %126 = vector.broadcast %cst_22 : f32 to vector<6x16x16xf32>
    %127 = arith.mulf %126, %120 : vector<6x16x16xf32>
    %128 = arith.addf %125, %127 : vector<6x16x16xf32>
    %129 = vector.extract_strided_slice %128 {offsets = [0, 0, 1], sizes = [6, 16, 15], strides = [1, 1, 1]} : vector<6x16x16xf32> to vector<6x16x15xf32>
    %130 = vector.extract_strided_slice %128 {offsets = [0, 0, 15], sizes = [6, 16, 1], strides = [1, 1, 1]} : vector<6x16x16xf32> to vector<6x16x1xf32>
    %131 = tpu.concatenate %129, %130 in 2 : vector<6x16x15xf32>, vector<6x16x1xf32> -> vector<6x16x16xf32>
    %132 = vector.extract_strided_slice %128 {offsets = [0, 0, 0], sizes = [6, 16, 1], strides = [1, 1, 1]} : vector<6x16x16xf32> to vector<6x16x1xf32>
    %133 = vector.extract_strided_slice %128 {offsets = [0, 0, 0], sizes = [6, 16, 15], strides = [1, 1, 1]} : vector<6x16x16xf32> to vector<6x16x15xf32>
    %134 = tpu.concatenate %132, %133 in 2 : vector<6x16x1xf32>, vector<6x16x15xf32> -> vector<6x16x16xf32>
    %135 = arith.addf %131, %134 : vector<6x16x16xf32>
    %136 = vector.extract_strided_slice %128 {offsets = [0, 0, 2], sizes = [6, 16, 14], strides = [1, 1, 1]} : vector<6x16x16xf32> to vector<6x16x14xf32>
    %137 = vector.extract_strided_slice %128 {offsets = [0, 0, 15], sizes = [6, 16, 1], strides = [1, 1, 1]} : vector<6x16x16xf32> to vector<6x16x1xf32>
    %138 = tpu.concatenate %136, %137, %137 in 2 : vector<6x16x14xf32>, vector<6x16x1xf32>, vector<6x16x1xf32> -> vector<6x16x16xf32>
    %139 = vector.extract_strided_slice %128 {offsets = [0, 0, 0], sizes = [6, 16, 1], strides = [1, 1, 1]} : vector<6x16x16xf32> to vector<6x16x1xf32>
    %140 = vector.extract_strided_slice %128 {offsets = [0, 0, 0], sizes = [6, 16, 14], strides = [1, 1, 1]} : vector<6x16x16xf32> to vector<6x16x14xf32>
    %141 = tpu.concatenate %139, %139, %140 in 2 : vector<6x16x1xf32>, vector<6x16x1xf32>, vector<6x16x14xf32> -> vector<6x16x16xf32>
    %142 = arith.addf %138, %141 : vector<6x16x16xf32>
    %cst_23 = arith.constant 4.000000e-01 : f32
    %143 = vector.broadcast %cst_23 : f32 to vector<6x16x16xf32>
    %144 = arith.mulf %143, %128 : vector<6x16x16xf32>
    %cst_24 = arith.constant 2.500000e-01 : f32
    %145 = vector.broadcast %cst_24 : f32 to vector<6x16x16xf32>
    %146 = arith.mulf %145, %135 : vector<6x16x16xf32>
    %147 = arith.addf %144, %146 : vector<6x16x16xf32>
    %cst_25 = arith.constant 5.000000e-02 : f32
    %148 = vector.broadcast %cst_25 : f32 to vector<6x16x16xf32>
    %149 = arith.mulf %148, %142 : vector<6x16x16xf32>
    %150 = arith.addf %147, %149 : vector<6x16x16xf32>
    %151 = vector.broadcast %13 : vector<1x16x16xf32> to vector<6x16x16xf32>
    %152 = arith.mulf %150, %151 : vector<6x16x16xf32>
    %153 = vector.extract_strided_slice %152 {offsets = [0, 1, 0], sizes = [6, 15, 16], strides = [1, 1, 1]} : vector<6x16x16xf32> to vector<6x15x16xf32>
    %154 = vector.extract_strided_slice %152 {offsets = [0, 15, 0], sizes = [6, 1, 16], strides = [1, 1, 1]} : vector<6x16x16xf32> to vector<6x1x16xf32>
    %155 = tpu.concatenate %153, %154 in 1 : vector<6x15x16xf32>, vector<6x1x16xf32> -> vector<6x16x16xf32>
    %156 = vector.extract_strided_slice %152 {offsets = [0, 0, 0], sizes = [6, 1, 16], strides = [1, 1, 1]} : vector<6x16x16xf32> to vector<6x1x16xf32>
    %157 = vector.extract_strided_slice %152 {offsets = [0, 0, 0], sizes = [6, 15, 16], strides = [1, 1, 1]} : vector<6x16x16xf32> to vector<6x15x16xf32>
    %158 = tpu.concatenate %156, %157 in 1 : vector<6x1x16xf32>, vector<6x15x16xf32> -> vector<6x16x16xf32>
    %159 = arith.addf %155, %158 : vector<6x16x16xf32>
    %160 = vector.extract_strided_slice %152 {offsets = [0, 2, 0], sizes = [6, 14, 16], strides = [1, 1, 1]} : vector<6x16x16xf32> to vector<6x14x16xf32>
    %161 = vector.extract_strided_slice %152 {offsets = [0, 15, 0], sizes = [6, 1, 16], strides = [1, 1, 1]} : vector<6x16x16xf32> to vector<6x1x16xf32>
    %162 = tpu.concatenate %160, %161, %161 in 1 : vector<6x14x16xf32>, vector<6x1x16xf32>, vector<6x1x16xf32> -> vector<6x16x16xf32>
    %163 = vector.extract_strided_slice %152 {offsets = [0, 0, 0], sizes = [6, 1, 16], strides = [1, 1, 1]} : vector<6x16x16xf32> to vector<6x1x16xf32>
    %164 = vector.extract_strided_slice %152 {offsets = [0, 0, 0], sizes = [6, 14, 16], strides = [1, 1, 1]} : vector<6x16x16xf32> to vector<6x14x16xf32>
    %165 = tpu.concatenate %163, %163, %164 in 1 : vector<6x1x16xf32>, vector<6x1x16xf32>, vector<6x14x16xf32> -> vector<6x16x16xf32>
    %166 = arith.addf %162, %165 : vector<6x16x16xf32>
    %cst_26 = arith.constant 4.000000e-01 : f32
    %167 = vector.broadcast %cst_26 : f32 to vector<6x16x16xf32>
    %168 = arith.mulf %167, %152 : vector<6x16x16xf32>
    %cst_27 = arith.constant 2.500000e-01 : f32
    %169 = vector.broadcast %cst_27 : f32 to vector<6x16x16xf32>
    %170 = arith.mulf %169, %159 : vector<6x16x16xf32>
    %171 = arith.addf %168, %170 : vector<6x16x16xf32>
    %cst_28 = arith.constant 5.000000e-02 : f32
    %172 = vector.broadcast %cst_28 : f32 to vector<6x16x16xf32>
    %173 = arith.mulf %172, %166 : vector<6x16x16xf32>
    %174 = arith.addf %171, %173 : vector<6x16x16xf32>
    %175 = vector.extract_strided_slice %174 {offsets = [0, 0, 1], sizes = [6, 16, 15], strides = [1, 1, 1]} : vector<6x16x16xf32> to vector<6x16x15xf32>
    %176 = vector.extract_strided_slice %174 {offsets = [0, 0, 15], sizes = [6, 16, 1], strides = [1, 1, 1]} : vector<6x16x16xf32> to vector<6x16x1xf32>
    %177 = tpu.concatenate %175, %176 in 2 : vector<6x16x15xf32>, vector<6x16x1xf32> -> vector<6x16x16xf32>
    %178 = vector.extract_strided_slice %174 {offsets = [0, 0, 0], sizes = [6, 16, 1], strides = [1, 1, 1]} : vector<6x16x16xf32> to vector<6x16x1xf32>
    %179 = vector.extract_strided_slice %174 {offsets = [0, 0, 0], sizes = [6, 16, 15], strides = [1, 1, 1]} : vector<6x16x16xf32> to vector<6x16x15xf32>
    %180 = tpu.concatenate %178, %179 in 2 : vector<6x16x1xf32>, vector<6x16x15xf32> -> vector<6x16x16xf32>
    %181 = arith.addf %177, %180 : vector<6x16x16xf32>
    %182 = vector.extract_strided_slice %174 {offsets = [0, 0, 2], sizes = [6, 16, 14], strides = [1, 1, 1]} : vector<6x16x16xf32> to vector<6x16x14xf32>
    %183 = vector.extract_strided_slice %174 {offsets = [0, 0, 15], sizes = [6, 16, 1], strides = [1, 1, 1]} : vector<6x16x16xf32> to vector<6x16x1xf32>
    %184 = tpu.concatenate %182, %183, %183 in 2 : vector<6x16x14xf32>, vector<6x16x1xf32>, vector<6x16x1xf32> -> vector<6x16x16xf32>
    %185 = vector.extract_strided_slice %174 {offsets = [0, 0, 0], sizes = [6, 16, 1], strides = [1, 1, 1]} : vector<6x16x16xf32> to vector<6x16x1xf32>
    %186 = vector.extract_strided_slice %174 {offsets = [0, 0, 0], sizes = [6, 16, 14], strides = [1, 1, 1]} : vector<6x16x16xf32> to vector<6x16x14xf32>
    %187 = tpu.concatenate %185, %185, %186 in 2 : vector<6x16x1xf32>, vector<6x16x1xf32>, vector<6x16x14xf32> -> vector<6x16x16xf32>
    %188 = arith.addf %184, %187 : vector<6x16x16xf32>
    %cst_29 = arith.constant 4.000000e-01 : f32
    %189 = vector.broadcast %cst_29 : f32 to vector<6x16x16xf32>
    %190 = arith.mulf %189, %174 : vector<6x16x16xf32>
    %cst_30 = arith.constant 2.500000e-01 : f32
    %191 = vector.broadcast %cst_30 : f32 to vector<6x16x16xf32>
    %192 = arith.mulf %191, %181 : vector<6x16x16xf32>
    %193 = arith.addf %190, %192 : vector<6x16x16xf32>
    %cst_31 = arith.constant 5.000000e-02 : f32
    %194 = vector.broadcast %cst_31 : f32 to vector<6x16x16xf32>
    %195 = arith.mulf %194, %188 : vector<6x16x16xf32>
    %196 = arith.addf %193, %195 : vector<6x16x16xf32>
    %197 = arith.subf %106, %196 : vector<6x16x16xf32>
    %198 = arith.subf %105, %197 : vector<6x16x16xf32>
    %199 = arith.mulf %198, %198 : vector<6x16x16xf32>
    %cst_32 = arith.constant 9.99999997E-7 : f32
    %200 = vector.broadcast %cst_32 : f32 to vector<6x16x16xf32>
    %201 = arith.addf %199, %200 : vector<6x16x16xf32>
    %202 = math.sqrt %201 : vector<6x16x16xf32>
    %cst_33 = arith.constant dense<0.000000e+00> : vector<16xf32>
    %203 = vector.multi_reduction <add>, %202, %cst_33 [0, 1] : vector<6x16x16xf32> to vector<16xf32>
    %204 = vector.shape_cast %203 : vector<16xf32> to vector<1x1x16xf32>
    %c0_34 = arith.constant 0 : index
    %c0_35 = arith.constant 0 : index
    %c0_36 = arith.constant 0 : index
    %205 = vector.load %arg3[%c0_34, %c0_35, %c0_36] : memref<1x1x16xf32, #tpu.memory_space<vmem>>, vector<1x1x16xf32>
    tpu.vector_store %arg3[%c0_34, %c0_35, %c0_36], %204 {strides = array<i32>} : memref<1x1x16xf32, #tpu.memory_space<vmem>>, vector<1x1x16xf32>,
    return
  }
  func.func @transform_0(%arg0: i32) -> (i32, i32, i32) {
    %c0_i32 = arith.constant 0 : i32
    %c0_i32_0 = arith.constant 0 : i32
    %c0_i32_1 = arith.constant 0 : i32
    return %arg0, %c0_i32, %c0_i32_0 : i32, i32, i32
  }
  func.func @transform_1(%arg0: i32) -> (i32, i32, i32) {
    %c0_i32 = arith.constant 0 : i32
    %c0_i32_0 = arith.constant 0 : i32
    %c0_i32_1 = arith.constant 0 : i32
    return %arg0, %c0_i32, %c0_i32_0 : i32, i32, i32
  }
  func.func @transform_2(%arg0: i32) -> (i32, i32, i32) {
    %c0_i32 = arith.constant 0 : i32
    %c0_i32_0 = arith.constant 0 : i32
    %c0_i32_1 = arith.constant 0 : i32
    return %arg0, %c0_i32, %c0_i32_0 : i32, i32, i32
  }
}

</mosaic_0001>

<llo_original>
// kernel: laplacian_loss.1
$region0: #{laplacian_loss.1}
  #allocation0 [shape = 'u32[]', space=smem, size = 0x4, offset = 0x4, fixed_abs, tag = 'smem constant byte address 0x4 - core index']
  #allocation1 [shape = 'u32[144,128]{1,0:T(1,128)}', space=vmem, size = 0x12000, scoped, tag = 'internal scratch']
  %s0 = inlined_call_operand.hbm [shape: f32[6,16,16], index: 0, kind: input, shape index: {}]
  %s1 = inlined_call_operand.hbm [shape: f32[6,16,16], index: 1, kind: input, shape index: {}]
  %s2 = inlined_call_operand.vmem [shape: f32[1,1,16], index: 2, kind: output, shape index: {}]
  %s3 = sld [smem:[#allocation0]]
  $region26: #{laplacian_loss.1} parent=0
    _
  %s5 = ssub.s32 1, %s3
  %s6 = scalar_select 0, %s5, %s3
  $region1: #{laplacian_loss.1} parent=0
    #allocation2 [shape = 'u8[49152]{0}', space=vmem, size = 0xc000, scoped, tag = 'input window, operand 0, single buffered']
    #allocation3 [shape = 's32[1]{0}', space=sflag, size = 0x4, scoped, tag = 'scoped memory for laplacian_loss.1']
    #allocation4 [shape = 'u8[49152]{0}', space=vmem, size = 0xc000, scoped, tag = 'input window, operand 1, single buffered']
    #allocation5 [shape = 's32[1]{0}', space=sflag, size = 0x4, scoped, tag = 'scoped memory for laplacian_loss.1']
    %7 = vsyncpa [#allocation3], 0
    %8 = vsyncpa [#allocation5], 0
    // Predicated region
    $region2: #{laplacian_loss.1} parent=1 // pred_check
      _
    $region3: #{laplacian_loss.1} parent=1 // pred_check_branch
      %10 = sbr.rel (0) target = $region5
    $region4: #{laplacian_loss.1} parent=1 // pred_region
      %s12 = ssub.s32 1536, 1536
      %13 = vsyncadd [#allocation3], %s12
      %s14 = sshll.u32 [#allocation2], 4
      %s15 = int_to_ptr.vmem [resolvable:$true] %s14
      %20 = dma.hbm_to_vmem [thread:$0]  %s0, 1536, %s15, [#allocation3], 128, 128, 8
    $region5: #{laplacian_loss.1} parent=1 // pred_fallthru
      _
    // Predicated region
    $region6: #{laplacian_loss.1} parent=1 // pred_check
      _
    $region7: #{laplacian_loss.1} parent=1 // pred_check_branch
      %22 = sbr.rel (0) target = $region9
    $region8: #{laplacian_loss.1} parent=1 // pred_region
      %s24 = ssub.s32 1536, 1536
      %25 = vsyncadd [#allocation5], %s24
      %s26 = sshll.u32 [#allocation4], 4
      %s27 = int_to_ptr.vmem [resolvable:$true] %s26
      %32 = dma.hbm_to_vmem [thread:$0]  %s1, 1536, %s27, [#allocation5], 128, 128, 8
    $region9: #{laplacian_loss.1} parent=1 // pred_fallthru
      _
    // Predicated region
    $region10: #{laplacian_loss.1} parent=1 // pred_check
      _
    $region11: #{laplacian_loss.1} parent=1 // pred_check_branch
      %34 = sbr.rel (0) target = $region13
    $region12: #{laplacian_loss.1} parent=1 // pred_region
      %35 = dma.done [#allocation3], 1536
    $region13: #{laplacian_loss.1} parent=1 // pred_fallthru
      _
    // Predicated region
    $region14: #{laplacian_loss.1} parent=1 // pred_check
      _
    $region15: #{laplacian_loss.1} parent=1 // pred_check_branch
      %37 = sbr.rel (0) target = $region17
    $region16: #{laplacian_loss.1} parent=1 // pred_region
      %38 = dma.done [#allocation5], 1536
    $region17: #{laplacian_loss.1} parent=1 // pred_fallthru
      _
    %v39 = vlaneseq
    %v40 = vshrl.u32 %v39, 7
    %v41 = vadd.s32 %v40, 8
    %v42 = vlaneseq
    %v43 = vand.u32 %v42, 127
    %v44 = vand.u32 %v40, 1
    %v45 = vand.u32 %v41, 1
    %vm46 = vcmp.eq.s32.totalorder %v44, 0
    %vm47 = vcmp.eq.s32.totalorder %v45, 0
    %v48 = vand.u32 %v43, 1
    %vm49 = vcmp.eq.s32.totalorder %v48, 0
    %vm50 = vmand %vm46, %vm49
    %vm51 = vmand %vm47, %vm49
    %v52 = vsel %vm50, 4.0, 0.0
    %v53 = vsel %vm51, 4.0, 0.0
    %v54 = vld [vmem:[#allocation2] sm:$0xff]
    %v55 = vld [vmem:[#allocation2 + $0x8] sm:$0xff]
    %v56 = vld [vmem:[#allocation2 + $0x10] sm:$0xff]
    %v57 = vld [vmem:[#allocation2 + $0x18] sm:$0xff]
    %v58 = vld [vmem:[#allocation2 + $0x20] sm:$0xff]
    %v59 = vld [vmem:[#allocation2 + $0x28] sm:$0xff]
    %v60 = vld [vmem:[#allocation2 + $0x30] sm:$0xff]
    %v61 = vld [vmem:[#allocation2 + $0x38] sm:$0xff]
    %v62 = vld [vmem:[#allocation2 + $0x40] sm:$0xff]
    %v63 = vld [vmem:[#allocation2 + $0x48] sm:$0xff]
    %v64 = vld [vmem:[#allocation2 + $0x50] sm:$0xff]
    %v65 = vld [vmem:[#allocation2 + $0x58] sm:$0xff]
    %vm78 = vcmask 1046528
    %v79 = vrot.slane %v54, 1
    %v80 = vrot.slane %v55, 1
    %v81 = vsel %vm78, %v79, %v80
    %v82 = vrot.slane %v56, 1
    %v83 = vrot.slane %v57, 1
    %v84 = vsel %vm78, %v82, %v83
    %v85 = vrot.slane %v58, 1
    %v86 = vrot.slane %v59, 1
    %v87 = vsel %vm78, %v85, %v86
    %v88 = vrot.slane %v60, 1
    %v89 = vrot.slane %v61, 1
    %v90 = vsel %vm78, %v88, %v89
    %v91 = vrot.slane %v62, 1
    %v92 = vrot.slane %v63, 1
    %v93 = vsel %vm78, %v91, %v92
    %v94 = vrot.slane %v64, 1
    %v95 = vrot.slane %v65, 1
    %v96 = vsel %vm78, %v94, %v95
    %v109 = vsel %vm78, %v80, %v55
    %v110 = vsel %vm78, %v83, %v57
    %v111 = vsel %vm78, %v86, %v59
    %v112 = vsel %vm78, %v89, %v61
    %v113 = vsel %vm78, %v92, %v63
    %v114 = vsel %vm78, %v95, %v65
    %vm115 = vcmask 1040384
    %v116 = vrot.slane %v54, 7
    %v117 = vrot.slane %v55, 7
    %v118 = vsel %vm115, %v116, %v117
    %v119 = vrot.slane %v56, 7
    %v120 = vrot.slane %v57, 7
    %v121 = vsel %vm115, %v119, %v120
    %v122 = vrot.slane %v58, 7
    %v123 = vrot.slane %v59, 7
    %v124 = vsel %vm115, %v122, %v123
    %v125 = vrot.slane %v60, 7
    %v126 = vrot.slane %v61, 7
    %v127 = vsel %vm115, %v125, %v126
    %v128 = vrot.slane %v62, 7
    %v129 = vrot.slane %v63, 7
    %v130 = vsel %vm115, %v128, %v129
    %v131 = vrot.slane %v64, 7
    %v132 = vrot.slane %v65, 7
    %v133 = vsel %vm115, %v131, %v132
    %v146 = vsel %vm115, %v54, %v116
    %v147 = vsel %vm115, %v56, %v119
    %v148 = vsel %vm115, %v58, %v122
    %v149 = vsel %vm115, %v60, %v125
    %v150 = vsel %vm115, %v62, %v128
    %v151 = vsel %vm115, %v64, %v131
    %v152 = vadd.f32 %v81, %v146
    %v153 = vadd.f32 %v109, %v118
    %v154 = vadd.f32 %v84, %v147
    %v155 = vadd.f32 %v110, %v121
    %v156 = vadd.f32 %v87, %v148
    %v157 = vadd.f32 %v111, %v124
    %v158 = vadd.f32 %v90, %v149
    %v159 = vadd.f32 %v112, %v127
    %v160 = vadd.f32 %v93, %v150
    %v161 = vadd.f32 %v113, %v130
    %v162 = vadd.f32 %v96, %v151
    %v163 = vadd.f32 %v114, %v133
    %vm164 = vcmask 1045504
    %v165 = vrot.slane %v54, 2
    %v166 = vrot.slane %v55, 2
    %v167 = vsel %vm164, %v165, %v166
    %v168 = vrot.slane %v56, 2
    %v169 = vrot.slane %v57, 2
    %v170 = vsel %vm164, %v168, %v169
    %v171 = vrot.slane %v58, 2
    %v172 = vrot.slane %v59, 2
    %v173 = vsel %vm164, %v171, %v172
    %v174 = vrot.slane %v60, 2
    %v175 = vrot.slane %v61, 2
    %v176 = vsel %vm164, %v174, %v175
    %v177 = vrot.slane %v62, 2
    %v178 = vrot.slane %v63, 2
    %v179 = vsel %vm164, %v177, %v178
    %v180 = vrot.slane %v64, 2
    %v181 = vrot.slane %v65, 2
    %v182 = vsel %vm164, %v180, %v181
    %v195 = vsel %vm164, %v166, %v80
    %v196 = vsel %vm164, %v169, %v83
    %v197 = vsel %vm164, %v172, %v86
    %v198 = vsel %vm164, %v175, %v89
    %v199 = vsel %vm164, %v178, %v92
    %v200 = vsel %vm164, %v181, %v95
    %v201 = vsel %vm78, %v195, %v55
    %v202 = vsel %vm78, %v196, %v57
    %v203 = vsel %vm78, %v197, %v59
    %v204 = vsel %vm78, %v198, %v61
    %v205 = vsel %vm78, %v199, %v63
    %v206 = vsel %vm78, %v200, %v65
    %vm207 = vcmask 1041408
    %v208 = vrot.slane %v54, 6
    %v209 = vrot.slane %v55, 6
    %v210 = vsel %vm207, %v208, %v209
    %v211 = vrot.slane %v56, 6
    %v212 = vrot.slane %v57, 6
    %v213 = vsel %vm207, %v211, %v212
    %v214 = vrot.slane %v58, 6
    %v215 = vrot.slane %v59, 6
    %v216 = vsel %vm207, %v214, %v215
    %v217 = vrot.slane %v60, 6
    %v218 = vrot.slane %v61, 6
    %v219 = vsel %vm207, %v217, %v218
    %v220 = vrot.slane %v62, 6
    %v221 = vrot.slane %v63, 6
    %v222 = vsel %vm207, %v220, %v221
    %v223 = vrot.slane %v64, 6
    %v224 = vrot.slane %v65, 6
    %v225 = vsel %vm207, %v223, %v224
    %v238 = vsel %vm207, %v146, %v208
    %v239 = vsel %vm207, %v147, %v211
    %v240 = vsel %vm207, %v148, %v214
    %v241 = vsel %vm207, %v149, %v217
    %v242 = vsel %vm207, %v150, %v220
    %v243 = vsel %vm207, %v151, %v223
    %v244 = vadd.f32 %v167, %v238
    %v245 = vadd.f32 %v201, %v210
    %v246 = vadd.f32 %v170, %v239
    %v247 = vadd.f32 %v202, %v213
    %v248 = vadd.f32 %v173, %v240
    %v249 = vadd.f32 %v203, %v216
    %v250 = vadd.f32 %v176, %v241
    %v251 = vadd.f32 %v204, %v219
    %v252 = vadd.f32 %v179, %v242
    %v253 = vadd.f32 %v205, %v222
    %v254 = vadd.f32 %v182, %v243
    %v255 = vadd.f32 %v206, %v225
    %v256 = vmul.f32 %v54, 0.4
    %v257 = vmul.f32 %v55, 0.4
    %v258 = vmul.f32 %v56, 0.4
    %v259 = vmul.f32 %v57, 0.4
    %v260 = vmul.f32 %v58, 0.4
    %v261 = vmul.f32 %v59, 0.4
    %v262 = vmul.f32 %v60, 0.4
    %v263 = vmul.f32 %v61, 0.4
    %v264 = vmul.f32 %v62, 0.4
    %v265 = vmul.f32 %v63, 0.4
    %v266 = vmul.f32 %v64, 0.4
    %v267 = vmul.f32 %v65, 0.4
    %v268 = vmul.f32 %v152, 0.25
    %v269 = vmul.f32 %v153, 0.25
    %v270 = vmul.f32 %v154, 0.25
    %v271 = vmul.f32 %v155, 0.25
    %v272 = vmul.f32 %v156, 0.25
    %v273 = vmul.f32 %v157, 0.25
    %v274 = vmul.f32 %v158, 0.25
    %v275 = vmul.f32 %v159, 0.25
    %v276 = vmul.f32 %v160, 0.25
    %v277 = vmul.f32 %v161, 0.25
    %v278 = vmul.f32 %v162, 0.25
    %v279 = vmul.f32 %v163, 0.25
    %v280 = vadd.f32 %v256, %v268
    %v281 = vadd.f32 %v257, %v269
    %v282 = vadd.f32 %v258, %v270
    %v283 = vadd.f32 %v259, %v271
    %v284 = vadd.f32 %v260, %v272
    %v285 = vadd.f32 %v261, %v273
    %v286 = vadd.f32 %v262, %v274
    %v287 = vadd.f32 %v263, %v275
    %v288 = vadd.f32 %v264, %v276
    %v289 = vadd.f32 %v265, %v277
    %v290 = vadd.f32 %v266, %v278
    %v291 = vadd.f32 %v267, %v279
    %v292 = vmul.f32 %v244, 0.05
    %v293 = vmul.f32 %v245, 0.05
    %v294 = vmul.f32 %v246, 0.05
    %v295 = vmul.f32 %v247, 0.05
    %v296 = vmul.f32 %v248, 0.05
    %v297 = vmul.f32 %v249, 0.05
    %v298 = vmul.f32 %v250, 0.05
    %v299 = vmul.f32 %v251, 0.05
    %v300 = vmul.f32 %v252, 0.05
    %v301 = vmul.f32 %v253, 0.05
    %v302 = vmul.f32 %v254, 0.05
    %v303 = vmul.f32 %v255, 0.05
    %v304 = vadd.f32 %v280, %v292
    %v305 = vadd.f32 %v281, %v293
    %v306 = vadd.f32 %v282, %v294
    %v307 = vadd.f32 %v283, %v295
    %v308 = vadd.f32 %v284, %v296
    %v309 = vadd.f32 %v285, %v297
    %v310 = vadd.f32 %v286, %v298
    %v311 = vadd.f32 %v287, %v299
    %v312 = vadd.f32 %v288, %v300
    %v313 = vadd.f32 %v289, %v301
    %v314 = vadd.f32 %v290, %v302
    %v315 = vadd.f32 %v291, %v303
    %328 = vrot.lane.b32.xlu0 %v304, 127
    %v329 = vpop.permute.xlu0 %328
    %330 = vrot.lane.b32.xlu0 %v305, 127
    %v331 = vpop.permute.xlu0 %330
    %332 = vrot.lane.b32.xlu0 %v306, 127
    %v333 = vpop.permute.xlu0 %332
    %334 = vrot.lane.b32.xlu0 %v307, 127
    %v335 = vpop.permute.xlu0 %334
    %336 = vrot.lane.b32.xlu0 %v308, 127
    %v337 = vpop.permute.xlu0 %336
    %338 = vrot.lane.b32.xlu0 %v309, 127
    %v339 = vpop.permute.xlu0 %338
    %340 = vrot.lane.b32.xlu0 %v310, 127
    %v341 = vpop.permute.xlu0 %340
    %342 = vrot.lane.b32.xlu0 %v311, 127
    %v343 = vpop.permute.xlu0 %342
    %344 = vrot.lane.b32.xlu0 %v312, 127
    %v345 = vpop.permute.xlu0 %344
    %346 = vrot.lane.b32.xlu0 %v313, 127
    %v347 = vpop.permute.xlu0 %346
    %348 = vrot.lane.b32.xlu0 %v314, 127
    %v349 = vpop.permute.xlu0 %348
    %350 = vrot.lane.b32.xlu0 %v315, 127
    %v351 = vpop.permute.xlu0 %350
    %vm364 = vcmask 121856
    %v365 = vsel %vm364, %v329, %v304
    %v366 = vsel %vm364, %v331, %v305
    %v367 = vsel %vm364, %v333, %v306
    %v368 = vsel %vm364, %v335, %v307
    %v369 = vsel %vm364, %v337, %v308
    %v370 = vsel %vm364, %v339, %v309
    %v371 = vsel %vm364, %v341, %v310
    %v372 = vsel %vm364, %v343, %v311
    %v373 = vsel %vm364, %v345, %v312
    %v374 = vsel %vm364, %v347, %v313
    %v375 = vsel %vm364, %v349, %v314
    %v376 = vsel %vm364, %v351, %v315
    %377 = vrot.lane.b32.xlu0 %v304, 1
    %v378 = vpop.permute.xlu0 %377
    %379 = vrot.lane.b32.xlu0 %v305, 1
    %v380 = vpop.permute.xlu0 %379
    %381 = vrot.lane.b32.xlu0 %v306, 1
    %v382 = vpop.permute.xlu0 %381
    %383 = vrot.lane.b32.xlu0 %v307, 1
    %v384 = vpop.permute.xlu0 %383
    %385 = vrot.lane.b32.xlu0 %v308, 1
    %v386 = vpop.permute.xlu0 %385
    %387 = vrot.lane.b32.xlu0 %v309, 1
    %v388 = vpop.permute.xlu0 %387
    %389 = vrot.lane.b32.xlu0 %v310, 1
    %v390 = vpop.permute.xlu0 %389
    %391 = vrot.lane.b32.xlu0 %v311, 1
    %v392 = vpop.permute.xlu0 %391
    %393 = vrot.lane.b32.xlu0 %v312, 1
    %v394 = vpop.permute.xlu0 %393
    %395 = vrot.lane.b32.xlu0 %v313, 1
    %v396 = vpop.permute.xlu0 %395
    %397 = vrot.lane.b32.xlu0 %v314, 1
    %v398 = vpop.permute.xlu0 %397
    %399 = vrot.lane.b32.xlu0 %v315, 1
    %v400 = vpop.permute.xlu0 %399
    %vm413 = vcmask 7168
    %v414 = vsel %vm413, %v304, %v378
    %v415 = vsel %vm413, %v305, %v380
    %v416 = vsel %vm413, %v306, %v382
    %v417 = vsel %vm413, %v307, %v384
    %v418 = vsel %vm413, %v308, %v386
    %v419 = vsel %vm413, %v309, %v388
    %v420 = vsel %vm413, %v310, %v390
    %v421 = vsel %vm413, %v311, %v392
    %v422 = vsel %vm413, %v312, %v394
    %v423 = vsel %vm413, %v313, %v396
    %v424 = vsel %vm413, %v314, %v398
    %v425 = vsel %vm413, %v315, %v400
    %v426 = vadd.f32 %v365, %v414
    %v427 = vadd.f32 %v366, %v415
    %v428 = vadd.f32 %v367, %v416
    %v429 = vadd.f32 %v368, %v417
    %v430 = vadd.f32 %v369, %v418
    %v431 = vadd.f32 %v370, %v419
    %v432 = vadd.f32 %v371, %v420
    %v433 = vadd.f32 %v372, %v421
    %v434 = vadd.f32 %v373, %v422
    %v435 = vadd.f32 %v374, %v423
    %v436 = vadd.f32 %v375, %v424
    %v437 = vadd.f32 %v376, %v425
    %438 = vrot.lane.b32.xlu0 %v304, 126
    %v439 = vpop.permute.xlu0 %438
    %440 = vrot.lane.b32.xlu0 %v305, 126
    %v441 = vpop.permute.xlu0 %440
    %442 = vrot.lane.b32.xlu0 %v306, 126
    %v443 = vpop.permute.xlu0 %442
    %444 = vrot.lane.b32.xlu0 %v307, 126
    %v445 = vpop.permute.xlu0 %444
    %446 = vrot.lane.b32.xlu0 %v308, 126
    %v447 = vpop.permute.xlu0 %446
    %448 = vrot.lane.b32.xlu0 %v309, 126
    %v449 = vpop.permute.xlu0 %448
    %450 = vrot.lane.b32.xlu0 %v310, 126
    %v451 = vpop.permute.xlu0 %450
    %452 = vrot.lane.b32.xlu0 %v311, 126
    %v453 = vpop.permute.xlu0 %452
    %454 = vrot.lane.b32.xlu0 %v312, 126
    %v455 = vpop.permute.xlu0 %454
    %456 = vrot.lane.b32.xlu0 %v313, 126
    %v457 = vpop.permute.xlu0 %456
    %458 = vrot.lane.b32.xlu0 %v314, 126
    %v459 = vpop.permute.xlu0 %458
    %460 = vrot.lane.b32.xlu0 %v315, 126
    %v461 = vpop.permute.xlu0 %460
    %vm474 = vcmask 113664
    %v475 = vsel %vm474, %v439, %v329
    %v476 = vsel %vm474, %v441, %v331
    %v477 = vsel %vm474, %v443, %v333
    %v478 = vsel %vm474, %v445, %v335
    %v479 = vsel %vm474, %v447, %v337
    %v480 = vsel %vm474, %v449, %v339
    %v481 = vsel %vm474, %v451, %v341
    %v482 = vsel %vm474, %v453, %v343
    %v483 = vsel %vm474, %v455, %v345
    %v484 = vsel %vm474, %v457, %v347
    %v485 = vsel %vm474, %v459, %v349
    %v486 = vsel %vm474, %v461, %v351
    %v487 = vsel %vm364, %v475, %v304
    %v488 = vsel %vm364, %v476, %v305
    %v489 = vsel %vm364, %v477, %v306
    %v490 = vsel %vm364, %v478, %v307
    %v491 = vsel %vm364, %v479, %v308
    %v492 = vsel %vm364, %v480, %v309
    %v493 = vsel %vm364, %v481, %v310
    %v494 = vsel %vm364, %v482, %v311
    %v495 = vsel %vm364, %v483, %v312
    %v496 = vsel %vm364, %v484, %v313
    %v497 = vsel %vm364, %v485, %v314
    %v498 = vsel %vm364, %v486, %v315
    %499 = vrot.lane.b32.xlu0 %v304, 2
    %v500 = vpop.permute.xlu0 %499
    %501 = vrot.lane.b32.xlu0 %v305, 2
    %v502 = vpop.permute.xlu0 %501
    %503 = vrot.lane.b32.xlu0 %v306, 2
    %v504 = vpop.permute.xlu0 %503
    %505 = vrot.lane.b32.xlu0 %v307, 2
    %v506 = vpop.permute.xlu0 %505
    %507 = vrot.lane.b32.xlu0 %v308, 2
    %v508 = vpop.permute.xlu0 %507
    %509 = vrot.lane.b32.xlu0 %v309, 2
    %v510 = vpop.permute.xlu0 %509
    %511 = vrot.lane.b32.xlu0 %v310, 2
    %v512 = vpop.permute.xlu0 %511
    %513 = vrot.lane.b32.xlu0 %v311, 2
    %v514 = vpop.permute.xlu0 %513
    %515 = vrot.lane.b32.xlu0 %v312, 2
    %v516 = vpop.permute.xlu0 %515
    %517 = vrot.lane.b32.xlu0 %v313, 2
    %v518 = vpop.permute.xlu0 %517
    %519 = vrot.lane.b32.xlu0 %v314, 2
    %v520 = vpop.permute.xlu0 %519
    %521 = vrot.lane.b32.xlu0 %v315, 2
    %v522 = vpop.permute.xlu0 %521
    %vm535 = vcmask 15360
    %v536 = vsel %vm535, %v414, %v500
    %v537 = vsel %vm535, %v415, %v502
    %v538 = vsel %vm535, %v416, %v504
    %v539 = vsel %vm535, %v417, %v506
    %v540 = vsel %vm535, %v418, %v508
    %v541 = vsel %vm535, %v419, %v510
    %v542 = vsel %vm535, %v420, %v512
    %v543 = vsel %vm535, %v421, %v514
    %v544 = vsel %vm535, %v422, %v516
    %v545 = vsel %vm535, %v423, %v518
    %v546 = vsel %vm535, %v424, %v520
    %v547 = vsel %vm535, %v425, %v522
    %v548 = vadd.f32 %v487, %v536
    %v549 = vadd.f32 %v488, %v537
    %v550 = vadd.f32 %v489, %v538
    %v551 = vadd.f32 %v490, %v539
    %v552 = vadd.f32 %v491, %v540
    %v553 = vadd.f32 %v492, %v541
    %v554 = vadd.f32 %v493, %v542
    %v555 = vadd.f32 %v494, %v543
    %v556 = vadd.f32 %v495, %v544
    %v557 = vadd.f32 %v496, %v545
    %v558 = vadd.f32 %v497, %v546
    %v559 = vadd.f32 %v498, %v547
    %v560 = vmul.f32 %v304, 0.4
    %v561 = vmul.f32 %v305, 0.4
    %v562 = vmul.f32 %v306, 0.4
    %v563 = vmul.f32 %v307, 0.4
    %v564 = vmul.f32 %v308, 0.4
    %v565 = vmul.f32 %v309, 0.4
    %v566 = vmul.f32 %v310, 0.4
    %v567 = vmul.f32 %v311, 0.4
    %v568 = vmul.f32 %v312, 0.4
    %v569 = vmul.f32 %v313, 0.4
    %v570 = vmul.f32 %v314, 0.4
    %v571 = vmul.f32 %v315, 0.4
    %v572 = vmul.f32 %v426, 0.25
    %v573 = vmul.f32 %v427, 0.25
    %v574 = vmul.f32 %v428, 0.25
    %v575 = vmul.f32 %v429, 0.25
    %v576 = vmul.f32 %v430, 0.25
    %v577 = vmul.f32 %v431, 0.25
    %v578 = vmul.f32 %v432, 0.25
    %v579 = vmul.f32 %v433, 0.25
    %v580 = vmul.f32 %v434, 0.25
    %v581 = vmul.f32 %v435, 0.25
    %v582 = vmul.f32 %v436, 0.25
    %v583 = vmul.f32 %v437, 0.25
    %v584 = vadd.f32 %v560, %v572
    %v585 = vadd.f32 %v561, %v573
    %v586 = vadd.f32 %v562, %v574
    %v587 = vadd.f32 %v563, %v575
    %v588 = vadd.f32 %v564, %v576
    %v589 = vadd.f32 %v565, %v577
    %v590 = vadd.f32 %v566, %v578
    %v591 = vadd.f32 %v567, %v579
    %v592 = vadd.f32 %v568, %v580
    %v593 = vadd.f32 %v569, %v581
    %v594 = vadd.f32 %v570, %v582
    %v595 = vadd.f32 %v571, %v583
    %v596 = vmul.f32 %v548, 0.05
    %v597 = vmul.f32 %v549, 0.05
    %v598 = vmul.f32 %v550, 0.05
    %v599 = vmul.f32 %v551, 0.05
    %v600 = vmul.f32 %v552, 0.05
    %v601 = vmul.f32 %v553, 0.05
    %v602 = vmul.f32 %v554, 0.05
    %v603 = vmul.f32 %v555, 0.05
    %v604 = vmul.f32 %v556, 0.05
    %v605 = vmul.f32 %v557, 0.05
    %v606 = vmul.f32 %v558, 0.05
    %v607 = vmul.f32 %v559, 0.05
    %v608 = vadd.f32 %v584, %v596
    %v609 = vadd.f32 %v585, %v597
    %v610 = vadd.f32 %v586, %v598
    %v611 = vadd.f32 %v587, %v599
    %v612 = vadd.f32 %v588, %v600
    %v613 = vadd.f32 %v589, %v601
    %v614 = vadd.f32 %v590, %v602
    %v615 = vadd.f32 %v591, %v603
    %v616 = vadd.f32 %v592, %v604
    %v617 = vadd.f32 %v593, %v605
    %v618 = vadd.f32 %v594, %v606
    %v619 = vadd.f32 %v595, %v607
    %v620 = vmul.f32 %v608, %v52
    %v621 = vmul.f32 %v609, %v53
    %v622 = vmul.f32 %v610, %v52
    %v623 = vmul.f32 %v611, %v53
    %v624 = vmul.f32 %v612, %v52
    %v625 = vmul.f32 %v613, %v53
    %v626 = vmul.f32 %v614, %v52
    %v627 = vmul.f32 %v615, %v53
    %v628 = vmul.f32 %v616, %v52
    %v629 = vmul.f32 %v617, %v53
    %v630 = vmul.f32 %v618, %v52
    %v631 = vmul.f32 %v619, %v53
    %v644 = vrot.slane %v620, 1
    %v645 = vrot.slane %v621, 1
    %v646 = vsel %vm78, %v644, %v645
    %v647 = vrot.slane %v622, 1
    %v648 = vrot.slane %v623, 1
    %v649 = vsel %vm78, %v647, %v648
    %v650 = vrot.slane %v624, 1
    %v651 = vrot.slane %v625, 1
    %v652 = vsel %vm78, %v650, %v651
    %v653 = vrot.slane %v626, 1
    %v654 = vrot.slane %v627, 1
    %v655 = vsel %vm78, %v653, %v654
    %v656 = vrot.slane %v628, 1
    %v657 = vrot.slane %v629, 1
    %v658 = vsel %vm78, %v656, %v657
    %v659 = vrot.slane %v630, 1
    %v660 = vrot.slane %v631, 1
    %v661 = vsel %vm78, %v659, %v660
    %v674 = vsel %vm78, %v645, %v621
    %v675 = vsel %vm78, %v648, %v623
    %v676 = vsel %vm78, %v651, %v625
    %v677 = vsel %vm78, %v654, %v627
    %v678 = vsel %vm78, %v657, %v629
    %v679 = vsel %vm78, %v660, %v631
    %v680 = vrot.slane %v620, 7
    %v681 = vrot.slane %v621, 7
    %v682 = vsel %vm115, %v680, %v681
    %v683 = vrot.slane %v622, 7
    %v684 = vrot.slane %v623, 7
    %v685 = vsel %vm115, %v683, %v684
    %v686 = vrot.slane %v624, 7
    %v687 = vrot.slane %v625, 7
    %v688 = vsel %vm115, %v686, %v687
    %v689 = vrot.slane %v626, 7
    %v690 = vrot.slane %v627, 7
    %v691 = vsel %vm115, %v689, %v690
    %v692 = vrot.slane %v628, 7
    %v693 = vrot.slane %v629, 7
    %v694 = vsel %vm115, %v692, %v693
    %v695 = vrot.slane %v630, 7
    %v696 = vrot.slane %v631, 7
    %v697 = vsel %vm115, %v695, %v696
    %v710 = vsel %vm115, %v620, %v680
    %v711 = vsel %vm115, %v622, %v683
    %v712 = vsel %vm115, %v624, %v686
    %v713 = vsel %vm115, %v626, %v689
    %v714 = vsel %vm115, %v628, %v692
    %v715 = vsel %vm115, %v630, %v695
    %v716 = vadd.f32 %v646, %v710
    %v717 = vadd.f32 %v674, %v682
    %v718 = vadd.f32 %v649, %v711
    %v719 = vadd.f32 %v675, %v685
    %v720 = vadd.f32 %v652, %v712
    %v721 = vadd.f32 %v676, %v688
    %v722 = vadd.f32 %v655, %v713
    %v723 = vadd.f32 %v677, %v691
    %v724 = vadd.f32 %v658, %v714
    %v725 = vadd.f32 %v678, %v694
    %v726 = vadd.f32 %v661, %v715
    %v727 = vadd.f32 %v679, %v697
    %v728 = vrot.slane %v620, 2
    %v729 = vrot.slane %v621, 2
    %v730 = vsel %vm164, %v728, %v729
    %v731 = vrot.slane %v622, 2
    %v732 = vrot.slane %v623, 2
    %v733 = vsel %vm164, %v731, %v732
    %v734 = vrot.slane %v624, 2
    %v735 = vrot.slane %v625, 2
    %v736 = vsel %vm164, %v734, %v735
    %v737 = vrot.slane %v626, 2
    %v738 = vrot.slane %v627, 2
    %v739 = vsel %vm164, %v737, %v738
    %v740 = vrot.slane %v628, 2
    %v741 = vrot.slane %v629, 2
    %v742 = vsel %vm164, %v740, %v741
    %v743 = vrot.slane %v630, 2
    %v744 = vrot.slane %v631, 2
    %v745 = vsel %vm164, %v743, %v744
    %v758 = vsel %vm164, %v729, %v645
    %v759 = vsel %vm164, %v732, %v648
    %v760 = vsel %vm164, %v735, %v651
    %v761 = vsel %vm164, %v738, %v654
    %v762 = vsel %vm164, %v741, %v657
    %v763 = vsel %vm164, %v744, %v660
    %v764 = vsel %vm78, %v758, %v621
    %v765 = vsel %vm78, %v759, %v623
    %v766 = vsel %vm78, %v760, %v625
    %v767 = vsel %vm78, %v761, %v627
    %v768 = vsel %vm78, %v762, %v629
    %v769 = vsel %vm78, %v763, %v631
    %v770 = vrot.slane %v620, 6
    %v771 = vrot.slane %v621, 6
    %v772 = vsel %vm207, %v770, %v771
    %v773 = vrot.slane %v622, 6
    %v774 = vrot.slane %v623, 6
    %v775 = vsel %vm207, %v773, %v774
    %v776 = vrot.slane %v624, 6
    %v777 = vrot.slane %v625, 6
    %v778 = vsel %vm207, %v776, %v777
    %v779 = vrot.slane %v626, 6
    %v780 = vrot.slane %v627, 6
    %v781 = vsel %vm207, %v779, %v780
    %v782 = vrot.slane %v628, 6
    %v783 = vrot.slane %v629, 6
    %v784 = vsel %vm207, %v782, %v783
    %v785 = vrot.slane %v630, 6
    %v786 = vrot.slane %v631, 6
    %v787 = vsel %vm207, %v785, %v786
    %v800 = vsel %vm207, %v710, %v770
    %v801 = vsel %vm207, %v711, %v773
    %v802 = vsel %vm207, %v712, %v776
    %v803 = vsel %vm207, %v713, %v779
    %v804 = vsel %vm207, %v714, %v782
    %v805 = vsel %vm207, %v715, %v785
    %v806 = vadd.f32 %v730, %v800
    %v807 = vadd.f32 %v764, %v772
    %v808 = vadd.f32 %v733, %v801
    %v809 = vadd.f32 %v765, %v775
    %v810 = vadd.f32 %v736, %v802
    %v811 = vadd.f32 %v766, %v778
    %v812 = vadd.f32 %v739, %v803
    %v813 = vadd.f32 %v767, %v781
    %v814 = vadd.f32 %v742, %v804
    %v815 = vadd.f32 %v768, %v784
    %v816 = vadd.f32 %v745, %v805
    %v817 = vadd.f32 %v769, %v787
    %v818 = vmul.f32 %v620, 0.4
    %v819 = vmul.f32 %v621, 0.4
    %v820 = vmul.f32 %v622, 0.4
    %v821 = vmul.f32 %v623, 0.4
    %v822 = vmul.f32 %v624, 0.4
    %v823 = vmul.f32 %v625, 0.4
    %v824 = vmul.f32 %v626, 0.4
    %v825 = vmul.f32 %v627, 0.4
    %v826 = vmul.f32 %v628, 0.4
    %v827 = vmul.f32 %v629, 0.4
    %v828 = vmul.f32 %v630, 0.4
    %v829 = vmul.f32 %v631, 0.4
    %v830 = vmul.f32 %v716, 0.25
    %v831 = vmul.f32 %v717, 0.25
    %v832 = vmul.f32 %v718, 0.25
    %v833 = vmul.f32 %v719, 0.25
    %v834 = vmul.f32 %v720, 0.25
    %v835 = vmul.f32 %v721, 0.25
    %v836 = vmul.f32 %v722, 0.25
    %v837 = vmul.f32 %v723, 0.25
    %v838 = vmul.f32 %v724, 0.25
    %v839 = vmul.f32 %v725, 0.25
    %v840 = vmul.f32 %v726, 0.25
    %v841 = vmul.f32 %v727, 0.25
    %v842 = vadd.f32 %v818, %v830
    %v843 = vadd.f32 %v819, %v831
    %v844 = vadd.f32 %v820, %v832
    %v845 = vadd.f32 %v821, %v833
    %v846 = vadd.f32 %v822, %v834
    %v847 = vadd.f32 %v823, %v835
    %v848 = vadd.f32 %v824, %v836
    %v849 = vadd.f32 %v825, %v837
    %v850 = vadd.f32 %v826, %v838
    %v851 = vadd.f32 %v827, %v839
    %v852 = vadd.f32 %v828, %v840
    %v853 = vadd.f32 %v829, %v841
    %v854 = vmul.f32 %v806, 0.05
    %v855 = vmul.f32 %v807, 0.05
    %v856 = vmul.f32 %v808, 0.05
    %v857 = vmul.f32 %v809, 0.05
    %v858 = vmul.f32 %v810, 0.05
    %v859 = vmul.f32 %v811, 0.05
    %v860 = vmul.f32 %v812, 0.05
    %v861 = vmul.f32 %v813, 0.05
    %v862 = vmul.f32 %v814, 0.05
    %v863 = vmul.f32 %v815, 0.05
    %v864 = vmul.f32 %v816, 0.05
    %v865 = vmul.f32 %v817, 0.05
    %v866 = vadd.f32 %v842, %v854
    %v867 = vadd.f32 %v843, %v855
    %v868 = vadd.f32 %v844, %v856
    %v869 = vadd.f32 %v845, %v857
    %v870 = vadd.f32 %v846, %v858
    %v871 = vadd.f32 %v847, %v859
    %v872 = vadd.f32 %v848, %v860
    %v873 = vadd.f32 %v849, %v861
    %v874 = vadd.f32 %v850, %v862
    %v875 = vadd.f32 %v851, %v863
    %v876 = vadd.f32 %v852, %v864
    %v877 = vadd.f32 %v853, %v865
    %890 = vrot.lane.b32.xlu0 %v866, 127
    %v891 = vpop.permute.xlu0 %890
    %892 = vrot.lane.b32.xlu0 %v867, 127
    %v893 = vpop.permute.xlu0 %892
    %894 = vrot.lane.b32.xlu0 %v868, 127
    %v895 = vpop.permute.xlu0 %894
    %896 = vrot.lane.b32.xlu0 %v869, 127
    %v897 = vpop.permute.xlu0 %896
    %898 = vrot.lane.b32.xlu0 %v870, 127
    %v899 = vpop.permute.xlu0 %898
    %900 = vrot.lane.b32.xlu0 %v871, 127
    %v901 = vpop.permute.xlu0 %900
    %902 = vrot.lane.b32.xlu0 %v872, 127
    %v903 = vpop.permute.xlu0 %902
    %904 = vrot.lane.b32.xlu0 %v873, 127
    %v905 = vpop.permute.xlu0 %904
    %906 = vrot.lane.b32.xlu0 %v874, 127
    %v907 = vpop.permute.xlu0 %906
    %908 = vrot.lane.b32.xlu0 %v875, 127
    %v909 = vpop.permute.xlu0 %908
    %910 = vrot.lane.b32.xlu0 %v876, 127
    %v911 = vpop.permute.xlu0 %910
    %912 = vrot.lane.b32.xlu0 %v877, 127
    %v913 = vpop.permute.xlu0 %912
    %v926 = vsel %vm364, %v891, %v866
    %v927 = vsel %vm364, %v893, %v867
    %v928 = vsel %vm364, %v895, %v868
    %v929 = vsel %vm364, %v897, %v869
    %v930 = vsel %vm364, %v899, %v870
    %v931 = vsel %vm364, %v901, %v871
    %v932 = vsel %vm364, %v903, %v872
    %v933 = vsel %vm364, %v905, %v873
    %v934 = vsel %vm364, %v907, %v874
    %v935 = vsel %vm364, %v909, %v875
    %v936 = vsel %vm364, %v911, %v876
    %v937 = vsel %vm364, %v913, %v877
    %938 = vrot.lane.b32.xlu0 %v866, 1
    %v939 = vpop.permute.xlu0 %938
    %940 = vrot.lane.b32.xlu0 %v867, 1
    %v941 = vpop.permute.xlu0 %940
    %942 = vrot.lane.b32.xlu0 %v868, 1
    %v943 = vpop.permute.xlu0 %942
    %944 = vrot.lane.b32.xlu0 %v869, 1
    %v945 = vpop.permute.xlu0 %944
    %946 = vrot.lane.b32.xlu0 %v870, 1
    %v947 = vpop.permute.xlu0 %946
    %948 = vrot.lane.b32.xlu0 %v871, 1
    %v949 = vpop.permute.xlu0 %948
    %950 = vrot.lane.b32.xlu0 %v872, 1
    %v951 = vpop.permute.xlu0 %950
    %952 = vrot.lane.b32.xlu0 %v873, 1
    %v953 = vpop.permute.xlu0 %952
    %954 = vrot.lane.b32.xlu0 %v874, 1
    %v955 = vpop.permute.xlu0 %954
    %956 = vrot.lane.b32.xlu0 %v875, 1
    %v957 = vpop.permute.xlu0 %956
    %958 = vrot.lane.b32.xlu0 %v876, 1
    %v959 = vpop.permute.xlu0 %958
    %960 = vrot.lane.b32.xlu0 %v877, 1
    %v961 = vpop.permute.xlu0 %960
    %v974 = vsel %vm413, %v866, %v939
    %v975 = vsel %vm413, %v867, %v941
    %v976 = vsel %vm413, %v868, %v943
    %v977 = vsel %vm413, %v869, %v945
    %v978 = vsel %vm413, %v870, %v947
    %v979 = vsel %vm413, %v871, %v949
    %v980 = vsel %vm413, %v872, %v951
    %v981 = vsel %vm413, %v873, %v953
    %v982 = vsel %vm413, %v874, %v955
    %v983 = vsel %vm413, %v875, %v957
    %v984 = vsel %vm413, %v876, %v959
    %v985 = vsel %vm413, %v877, %v961
    %v986 = vadd.f32 %v926, %v974
    %v987 = vadd.f32 %v927, %v975
    %v988 = vadd.f32 %v928, %v976
    %v989 = vadd.f32 %v929, %v977
    %v990 = vadd.f32 %v930, %v978
    %v991 = vadd.f32 %v931, %v979
    %v992 = vadd.f32 %v932, %v980
    %v993 = vadd.f32 %v933, %v981
    %v994 = vadd.f32 %v934, %v982
    %v995 = vadd.f32 %v935, %v983
    %v996 = vadd.f32 %v936, %v984
    %v997 = vadd.f32 %v937, %v985
    %998 = vrot.lane.b32.xlu0 %v866, 126
    %v999 = vpop.permute.xlu0 %998
    %1000 = vrot.lane.b32.xlu0 %v867, 126
    %v1001 = vpop.permute.xlu0 %1000
    %1002 = vrot.lane.b32.xlu0 %v868, 126
    %v1003 = vpop.permute.xlu0 %1002
    %1004 = vrot.lane.b32.xlu0 %v869, 126
    %v1005 = vpop.permute.xlu0 %1004
    %1006 = vrot.lane.b32.xlu0 %v870, 126
    %v1007 = vpop.permute.xlu0 %1006
    %1008 = vrot.lane.b32.xlu0 %v871, 126
    %v1009 = vpop.permute.xlu0 %1008
    %1010 = vrot.lane.b32.xlu0 %v872, 126
    %v1011 = vpop.permute.xlu0 %1010
    %1012 = vrot.lane.b32.xlu0 %v873, 126
    %v1013 = vpop.permute.xlu0 %1012
    %1014 = vrot.lane.b32.xlu0 %v874, 126
    %v1015 = vpop.permute.xlu0 %1014
    %1016 = vrot.lane.b32.xlu0 %v875, 126
    %v1017 = vpop.permute.xlu0 %1016
    %1018 = vrot.lane.b32.xlu0 %v876, 126
    %v1019 = vpop.permute.xlu0 %1018
    %1020 = vrot.lane.b32.xlu0 %v877, 126
    %v1021 = vpop.permute.xlu0 %1020
    %v1034 = vsel %vm474, %v999, %v891
    %v1035 = vsel %vm474, %v1001, %v893
    %v1036 = vsel %vm474, %v1003, %v895
    %v1037 = vsel %vm474, %v1005, %v897
    %v1038 = vsel %vm474, %v1007, %v899
    %v1039 = vsel %vm474, %v1009, %v901
    %v1040 = vsel %vm474, %v1011, %v903
    %v1041 = vsel %vm474, %v1013, %v905
    %v1042 = vsel %vm474, %v1015, %v907
    %v1043 = vsel %vm474, %v1017, %v909
    %v1044 = vsel %vm474, %v1019, %v911
    %v1045 = vsel %vm474, %v1021, %v913
    %v1046 = vsel %vm364, %v1034, %v866
    %v1047 = vsel %vm364, %v1035, %v867
    %v1048 = vsel %vm364, %v1036, %v868
    %v1049 = vsel %vm364, %v1037, %v869
    %v1050 = vsel %vm364, %v1038, %v870
    %v1051 = vsel %vm364, %v1039, %v871
    %v1052 = vsel %vm364, %v1040, %v872
    %v1053 = vsel %vm364, %v1041, %v873
    %v1054 = vsel %vm364, %v1042, %v874
    %v1055 = vsel %vm364, %v1043, %v875
    %v1056 = vsel %vm364, %v1044, %v876
    %v1057 = vsel %vm364, %v1045, %v877
    %1058 = vrot.lane.b32.xlu0 %v866, 2
    %v1059 = vpop.permute.xlu0 %1058
    %1060 = vrot.lane.b32.xlu0 %v867, 2
    %v1061 = vpop.permute.xlu0 %1060
    %1062 = vrot.lane.b32.xlu0 %v868, 2
    %v1063 = vpop.permute.xlu0 %1062
    %1064 = vrot.lane.b32.xlu0 %v869, 2
    %v1065 = vpop.permute.xlu0 %1064
    %1066 = vrot.lane.b32.xlu0 %v870, 2
    %v1067 = vpop.permute.xlu0 %1066
    %1068 = vrot.lane.b32.xlu0 %v871, 2
    %v1069 = vpop.permute.xlu0 %1068
    %1070 = vrot.lane.b32.xlu0 %v872, 2
    %v1071 = vpop.permute.xlu0 %1070
    %1072 = vrot.lane.b32.xlu0 %v873, 2
    %v1073 = vpop.permute.xlu0 %1072
    %1074 = vrot.lane.b32.xlu0 %v874, 2
    %v1075 = vpop.permute.xlu0 %1074
    %1076 = vrot.lane.b32.xlu0 %v875, 2
    %v1077 = vpop.permute.xlu0 %1076
    %1078 = vrot.lane.b32.xlu0 %v876, 2
    %v1079 = vpop.permute.xlu0 %1078
    %1080 = vrot.lane.b32.xlu0 %v877, 2
    %v1081 = vpop.permute.xlu0 %1080
    %v1094 = vsel %vm535, %v974, %v1059
    %v1095 = vsel %vm535, %v975, %v1061
    %v1096 = vsel %vm535, %v976, %v1063
    %v1097 = vsel %vm535, %v977, %v1065
    %v1098 = vsel %vm535, %v978, %v1067
    %v1099 = vsel %vm535, %v979, %v1069
    %v1100 = vsel %vm535, %v980, %v1071
    %v1101 = vsel %vm535, %v981, %v1073
    %v1102 = vsel %vm535, %v982, %v1075
    %v1103 = vsel %vm535, %v983, %v1077
    %v1104 = vsel %vm535, %v984, %v1079
    %v1105 = vsel %vm535, %v985, %v1081
    %v1106 = vadd.f32 %v1046, %v1094
    %v1107 = vadd.f32 %v1047, %v1095
    %v1108 = vadd.f32 %v1048, %v1096
    %v1109 = vadd.f32 %v1049, %v1097
    %v1110 = vadd.f32 %v1050, %v1098
    %v1111 = vadd.f32 %v1051, %v1099
    %v1112 = vadd.f32 %v1052, %v1100
    %v1113 = vadd.f32 %v1053, %v1101
    %v1114 = vadd.f32 %v1054, %v1102
    %v1115 = vadd.f32 %v1055, %v1103
    %v1116 = vadd.f32 %v1056, %v1104
    %v1117 = vadd.f32 %v1057, %v1105
    %v1118 = vmul.f32 %v866, 0.4
    %v1119 = vmul.f32 %v867, 0.4
    %v1120 = vmul.f32 %v868, 0.4
    %v1121 = vmul.f32 %v869, 0.4
    %v1122 = vmul.f32 %v870, 0.4
    %v1123 = vmul.f32 %v871, 0.4
    %v1124 = vmul.f32 %v872, 0.4
    %v1125 = vmul.f32 %v873, 0.4
    %v1126 = vmul.f32 %v874, 0.4
    %v1127 = vmul.f32 %v875, 0.4
    %v1128 = vmul.f32 %v876, 0.4
    %v1129 = vmul.f32 %v877, 0.4
    %v1130 = vmul.f32 %v986, 0.25
    %v1131 = vmul.f32 %v987, 0.25
    %v1132 = vmul.f32 %v988, 0.25
    %v1133 = vmul.f32 %v989, 0.25
    %v1134 = vmul.f32 %v990, 0.25
    %v1135 = vmul.f32 %v991, 0.25
    %v1136 = vmul.f32 %v992, 0.25
    %v1137 = vmul.f32 %v993, 0.25
    %v1138 = vmul.f32 %v994, 0.25
    %v1139 = vmul.f32 %v995, 0.25
    %v1140 = vmul.f32 %v996, 0.25
    %v1141 = vmul.f32 %v997, 0.25
    %v1142 = vadd.f32 %v1118, %v1130
    %v1143 = vadd.f32 %v1119, %v1131
    %v1144 = vadd.f32 %v1120, %v1132
    %v1145 = vadd.f32 %v1121, %v1133
    %v1146 = vadd.f32 %v1122, %v1134
    %v1147 = vadd.f32 %v1123, %v1135
    %v1148 = vadd.f32 %v1124, %v1136
    %v1149 = vadd.f32 %v1125, %v1137
    %v1150 = vadd.f32 %v1126, %v1138
    %v1151 = vadd.f32 %v1127, %v1139
    %v1152 = vadd.f32 %v1128, %v1140
    %v1153 = vadd.f32 %v1129, %v1141
    %v1154 = vmul.f32 %v1106, 0.05
    %v1155 = vmul.f32 %v1107, 0.05
    %v1156 = vmul.f32 %v1108, 0.05
    %v1157 = vmul.f32 %v1109, 0.05
    %v1158 = vmul.f32 %v1110, 0.05
    %v1159 = vmul.f32 %v1111, 0.05
    %v1160 = vmul.f32 %v1112, 0.05
    %v1161 = vmul.f32 %v1113, 0.05
    %v1162 = vmul.f32 %v1114, 0.05
    %v1163 = vmul.f32 %v1115, 0.05
    %v1164 = vmul.f32 %v1116, 0.05
    %v1165 = vmul.f32 %v1117, 0.05
    %v1166 = vadd.f32 %v1142, %v1154
    %v1167 = vadd.f32 %v1143, %v1155
    %v1168 = vadd.f32 %v1144, %v1156
    %v1169 = vadd.f32 %v1145, %v1157
    %v1170 = vadd.f32 %v1146, %v1158
    %v1171 = vadd.f32 %v1147, %v1159
    %v1172 = vadd.f32 %v1148, %v1160
    %v1173 = vadd.f32 %v1149, %v1161
    %v1174 = vadd.f32 %v1150, %v1162
    %v1175 = vadd.f32 %v1151, %v1163
    %v1176 = vadd.f32 %v1152, %v1164
    %v1177 = vadd.f32 %v1153, %v1165
    %v1178 = vsub.f32 %v54, %v1166
    %v1179 = vsub.f32 %v55, %v1167
    %v1180 = vsub.f32 %v56, %v1168
    %v1181 = vsub.f32 %v57, %v1169
    %v1182 = vsub.f32 %v58, %v1170
    %v1183 = vsub.f32 %v59, %v1171
    %v1184 = vsub.f32 %v60, %v1172
    %v1185 = vsub.f32 %v61, %v1173
    %v1186 = vsub.f32 %v62, %v1174
    %v1187 = vsub.f32 %v63, %v1175
    %v1188 = vsub.f32 %v64, %v1176
    %v1189 = vsub.f32 %v65, %v1177
    %v1190 = vld [vmem:[#allocation4] sm:$0xff]
    %v1191 = vld [vmem:[#allocation4 + $0x8] sm:$0xff]
    %v1192 = vld [vmem:[#allocation4 + $0x10] sm:$0xff]
    %v1193 = vld [vmem:[#allocation4 + $0x18] sm:$0xff]
    %v1194 = vld [vmem:[#allocation4 + $0x20] sm:$0xff]
    %v1195 = vld [vmem:[#allocation4 + $0x28] sm:$0xff]
    %v1196 = vld [vmem:[#allocation4 + $0x30] sm:$0xff]
    %v1197 = vld [vmem:[#allocation4 + $0x38] sm:$0xff]
    %v1198 = vld [vmem:[#allocation4 + $0x40] sm:$0xff]
    %v1199 = vld [vmem:[#allocation4 + $0x48] sm:$0xff]
    %v1200 = vld [vmem:[#allocation4 + $0x50] sm:$0xff]
    %v1201 = vld [vmem:[#allocation4 + $0x58] sm:$0xff]
    %v1214 = vrot.slane %v1190, 1
    %v1215 = vrot.slane %v1191, 1
    %v1216 = vsel %vm78, %v1214, %v1215
    %v1217 = vrot.slane %v1192, 1
    %v1218 = vrot.slane %v1193, 1
    %v1219 = vsel %vm78, %v1217, %v1218
    %v1220 = vrot.slane %v1194, 1
    %v1221 = vrot.slane %v1195, 1
    %v1222 = vsel %vm78, %v1220, %v1221
    %v1223 = vrot.slane %v1196, 1
    %v1224 = vrot.slane %v1197, 1
    %v1225 = vsel %vm78, %v1223, %v1224
    %v1226 = vrot.slane %v1198, 1
    %v1227 = vrot.slane %v1199, 1
    %v1228 = vsel %vm78, %v1226, %v1227
    %v1229 = vrot.slane %v1200, 1
    %v1230 = vrot.slane %v1201, 1
    %v1231 = vsel %vm78, %v1229, %v1230
    %v1244 = vsel %vm78, %v1215, %v1191
    %v1245 = vsel %vm78, %v1218, %v1193
    %v1246 = vsel %vm78, %v1221, %v1195
    %v1247 = vsel %vm78, %v1224, %v1197
    %v1248 = vsel %vm78, %v1227, %v1199
    %v1249 = vsel %vm78, %v1230, %v1201
    %v1250 = vrot.slane %v1190, 7
    %v1251 = vrot.slane %v1191, 7
    %v1252 = vsel %vm115, %v1250, %v1251
    %v1253 = vrot.slane %v1192, 7
    %v1254 = vrot.slane %v1193, 7
    %v1255 = vsel %vm115, %v1253, %v1254
    %v1256 = vrot.slane %v1194, 7
    %v1257 = vrot.slane %v1195, 7
    %v1258 = vsel %vm115, %v1256, %v1257
    %v1259 = vrot.slane %v1196, 7
    %v1260 = vrot.slane %v1197, 7
    %v1261 = vsel %vm115, %v1259, %v1260
    %v1262 = vrot.slane %v1198, 7
    %v1263 = vrot.slane %v1199, 7
    %v1264 = vsel %vm115, %v1262, %v1263
    %v1265 = vrot.slane %v1200, 7
    %v1266 = vrot.slane %v1201, 7
    %v1267 = vsel %vm115, %v1265, %v1266
    %v1280 = vsel %vm115, %v1190, %v1250
    %v1281 = vsel %vm115, %v1192, %v1253
    %v1282 = vsel %vm115, %v1194, %v1256
    %v1283 = vsel %vm115, %v1196, %v1259
    %v1284 = vsel %vm115, %v1198, %v1262
    %v1285 = vsel %vm115, %v1200, %v1265
    %v1286 = vadd.f32 %v1216, %v1280
    %v1287 = vadd.f32 %v1244, %v1252
    %v1288 = vadd.f32 %v1219, %v1281
    %v1289 = vadd.f32 %v1245, %v1255
    %v1290 = vadd.f32 %v1222, %v1282
    %v1291 = vadd.f32 %v1246, %v1258
    %v1292 = vadd.f32 %v1225, %v1283
    %v1293 = vadd.f32 %v1247, %v1261
    %v1294 = vadd.f32 %v1228, %v1284
    %v1295 = vadd.f32 %v1248, %v1264
    %v1296 = vadd.f32 %v1231, %v1285
    %v1297 = vadd.f32 %v1249, %v1267
    %v1298 = vrot.slane %v1190, 2
    %v1299 = vrot.slane %v1191, 2
    %v1300 = vsel %vm164, %v1298, %v1299
    %v1301 = vrot.slane %v1192, 2
    %v1302 = vrot.slane %v1193, 2
    %v1303 = vsel %vm164, %v1301, %v1302
    %v1304 = vrot.slane %v1194, 2
    %v1305 = vrot.slane %v1195, 2
    %v1306 = vsel %vm164, %v1304, %v1305
    %v1307 = vrot.slane %v1196, 2
    %v1308 = vrot.slane %v1197, 2
    %v1309 = vsel %vm164, %v1307, %v1308
    %v1310 = vrot.slane %v1198, 2
    %v1311 = vrot.slane %v1199, 2
    %v1312 = vsel %vm164, %v1310, %v1311
    %v1313 = vrot.slane %v1200, 2
    %v1314 = vrot.slane %v1201, 2
    %v1315 = vsel %vm164, %v1313, %v1314
    %v1328 = vsel %vm164, %v1299, %v1215
    %v1329 = vsel %vm164, %v1302, %v1218
    %v1330 = vsel %vm164, %v1305, %v1221
    %v1331 = vsel %vm164, %v1308, %v1224
    %v1332 = vsel %vm164, %v1311, %v1227
    %v1333 = vsel %vm164, %v1314, %v1230
    %v1334 = vsel %vm78, %v1328, %v1191
    %v1335 = vsel %vm78, %v1329, %v1193
    %v1336 = vsel %vm78, %v1330, %v1195
    %v1337 = vsel %vm78, %v1331, %v1197
    %v1338 = vsel %vm78, %v1332, %v1199
    %v1339 = vsel %vm78, %v1333, %v1201
    %v1340 = vrot.slane %v1190, 6
    %v1341 = vrot.slane %v1191, 6
    %v1342 = vsel %vm207, %v1340, %v1341
    %v1343 = vrot.slane %v1192, 6
    %v1344 = vrot.slane %v1193, 6
    %v1345 = vsel %vm207, %v1343, %v1344
    %v1346 = vrot.slane %v1194, 6
    %v1347 = vrot.slane %v1195, 6
    %v1348 = vsel %vm207, %v1346, %v1347
    %v1349 = vrot.slane %v1196, 6
    %v1350 = vrot.slane %v1197, 6
    %v1351 = vsel %vm207, %v1349, %v1350
    %v1352 = vrot.slane %v1198, 6
    %v1353 = vrot.slane %v1199, 6
    %v1354 = vsel %vm207, %v1352, %v1353
    %v1355 = vrot.slane %v1200, 6
    %v1356 = vrot.slane %v1201, 6
    %v1357 = vsel %vm207, %v1355, %v1356
    %v1370 = vsel %vm207, %v1280, %v1340
    %v1371 = vsel %vm207, %v1281, %v1343
    %v1372 = vsel %vm207, %v1282, %v1346
    %v1373 = vsel %vm207, %v1283, %v1349
    %v1374 = vsel %vm207, %v1284, %v1352
    %v1375 = vsel %vm207, %v1285, %v1355
    %v1376 = vadd.f32 %v1300, %v1370
    %v1377 = vadd.f32 %v1334, %v1342
    %v1378 = vadd.f32 %v1303, %v1371
    %v1379 = vadd.f32 %v1335, %v1345
    %v1380 = vadd.f32 %v1306, %v1372
    %v1381 = vadd.f32 %v1336, %v1348
    %v1382 = vadd.f32 %v1309, %v1373
    %v1383 = vadd.f32 %v1337, %v1351
    %v1384 = vadd.f32 %v1312, %v1374
    %v1385 = vadd.f32 %v1338, %v1354
    %v1386 = vadd.f32 %v1315, %v1375
    %v1387 = vadd.f32 %v1339, %v1357
    %v1388 = vmul.f32 %v1190, 0.4
    %v1389 = vmul.f32 %v1191, 0.4
    %v1390 = vmul.f32 %v1192, 0.4
    %v1391 = vmul.f32 %v1193, 0.4
    %v1392 = vmul.f32 %v1194, 0.4
    %v1393 = vmul.f32 %v1195, 0.4
    %v1394 = vmul.f32 %v1196, 0.4
    %v1395 = vmul.f32 %v1197, 0.4
    %v1396 = vmul.f32 %v1198, 0.4
    %v1397 = vmul.f32 %v1199, 0.4
    %v1398 = vmul.f32 %v1200, 0.4
    %v1399 = vmul.f32 %v1201, 0.4
    %v1400 = vmul.f32 %v1286, 0.25
    %v1401 = vmul.f32 %v1287, 0.25
    %v1402 = vmul.f32 %v1288, 0.25
    %v1403 = vmul.f32 %v1289, 0.25
    %v1404 = vmul.f32 %v1290, 0.25
    %v1405 = vmul.f32 %v1291, 0.25
    %v1406 = vmul.f32 %v1292, 0.25
    %v1407 = vmul.f32 %v1293, 0.25
    %v1408 = vmul.f32 %v1294, 0.25
    %v1409 = vmul.f32 %v1295, 0.25
    %v1410 = vmul.f32 %v1296, 0.25
    %v1411 = vmul.f32 %v1297, 0.25
    %v1412 = vadd.f32 %v1388, %v1400
    %v1413 = vadd.f32 %v1389, %v1401
    %v1414 = vadd.f32 %v1390, %v1402
    %v1415 = vadd.f32 %v1391, %v1403
    %v1416 = vadd.f32 %v1392, %v1404
    %v1417 = vadd.f32 %v1393, %v1405
    %v1418 = vadd.f32 %v1394, %v1406
    %v1419 = vadd.f32 %v1395, %v1407
    %v1420 = vadd.f32 %v1396, %v1408
    %v1421 = vadd.f32 %v1397, %v1409
    %v1422 = vadd.f32 %v1398, %v1410
    %v1423 = vadd.f32 %v1399, %v1411
    %v1424 = vmul.f32 %v1376, 0.05
    %v1425 = vmul.f32 %v1377, 0.05
    %v1426 = vmul.f32 %v1378, 0.05
    %v1427 = vmul.f32 %v1379, 0.05
    %v1428 = vmul.f32 %v1380, 0.05
    %v1429 = vmul.f32 %v1381, 0.05
    %v1430 = vmul.f32 %v1382, 0.05
    %v1431 = vmul.f32 %v1383, 0.05
    %v1432 = vmul.f32 %v1384, 0.05
    %v1433 = vmul.f32 %v1385, 0.05
    %v1434 = vmul.f32 %v1386, 0.05
    %v1435 = vmul.f32 %v1387, 0.05
    %v1436 = vadd.f32 %v1412, %v1424
    %v1437 = vadd.f32 %v1413, %v1425
    %v1438 = vadd.f32 %v1414, %v1426
    %v1439 = vadd.f32 %v1415, %v1427
    %v1440 = vadd.f32 %v1416, %v1428
    %v1441 = vadd.f32 %v1417, %v1429
    %v1442 = vadd.f32 %v1418, %v1430
    %v1443 = vadd.f32 %v1419, %v1431
    %v1444 = vadd.f32 %v1420, %v1432
    %v1445 = vadd.f32 %v1421, %v1433
    %v1446 = vadd.f32 %v1422, %v1434
    %v1447 = vadd.f32 %v1423, %v1435
    %1460 = vrot.lane.b32.xlu0 %v1436, 127
    %v1461 = vpop.permute.xlu0 %1460
    %1462 = vrot.lane.b32.xlu0 %v1437, 127
    %v1463 = vpop.permute.xlu0 %1462
    %1464 = vrot.lane.b32.xlu0 %v1438, 127
    %v1465 = vpop.permute.xlu0 %1464
    %1466 = vrot.lane.b32.xlu0 %v1439, 127
    %v1467 = vpop.permute.xlu0 %1466
    %1468 = vrot.lane.b32.xlu0 %v1440, 127
    %v1469 = vpop.permute.xlu0 %1468
    %1470 = vrot.lane.b32.xlu0 %v1441, 127
    %v1471 = vpop.permute.xlu0 %1470
    %1472 = vrot.lane.b32.xlu0 %v1442, 127
    %v1473 = vpop.permute.xlu0 %1472
    %1474 = vrot.lane.b32.xlu0 %v1443, 127
    %v1475 = vpop.permute.xlu0 %1474
    %1476 = vrot.lane.b32.xlu0 %v1444, 127
    %v1477 = vpop.permute.xlu0 %1476
    %1478 = vrot.lane.b32.xlu0 %v1445, 127
    %v1479 = vpop.permute.xlu0 %1478
    %1480 = vrot.lane.b32.xlu0 %v1446, 127
    %v1481 = vpop.permute.xlu0 %1480
    %1482 = vrot.lane.b32.xlu0 %v1447, 127
    %v1483 = vpop.permute.xlu0 %1482
    %v1496 = vsel %vm364, %v1461, %v1436
    %v1497 = vsel %vm364, %v1463, %v1437
    %v1498 = vsel %vm364, %v1465, %v1438
    %v1499 = vsel %vm364, %v1467, %v1439
    %v1500 = vsel %vm364, %v1469, %v1440
    %v1501 = vsel %vm364, %v1471, %v1441
    %v1502 = vsel %vm364, %v1473, %v1442
    %v1503 = vsel %vm364, %v1475, %v1443
    %v1504 = vsel %vm364, %v1477, %v1444
    %v1505 = vsel %vm364, %v1479, %v1445
    %v1506 = vsel %vm364, %v1481, %v1446
    %v1507 = vsel %vm364, %v1483, %v1447
    %1508 = vrot.lane.b32.xlu0 %v1436, 1
    %v1509 = vpop.permute.xlu0 %1508
    %1510 = vrot.lane.b32.xlu0 %v1437, 1
    %v1511 = vpop.permute.xlu0 %1510
    %1512 = vrot.lane.b32.xlu0 %v1438, 1
    %v1513 = vpop.permute.xlu0 %1512
    %1514 = vrot.lane.b32.xlu0 %v1439, 1
    %v1515 = vpop.permute.xlu0 %1514
    %1516 = vrot.lane.b32.xlu0 %v1440, 1
    %v1517 = vpop.permute.xlu0 %1516
    %1518 = vrot.lane.b32.xlu0 %v1441, 1
    %v1519 = vpop.permute.xlu0 %1518
    %1520 = vrot.lane.b32.xlu0 %v1442, 1
    %v1521 = vpop.permute.xlu0 %1520
    %1522 = vrot.lane.b32.xlu0 %v1443, 1
    %v1523 = vpop.permute.xlu0 %1522
    %1524 = vrot.lane.b32.xlu0 %v1444, 1
    %v1525 = vpop.permute.xlu0 %1524
    %1526 = vrot.lane.b32.xlu0 %v1445, 1
    %v1527 = vpop.permute.xlu0 %1526
    %1528 = vrot.lane.b32.xlu0 %v1446, 1
    %v1529 = vpop.permute.xlu0 %1528
    %1530 = vrot.lane.b32.xlu0 %v1447, 1
    %v1531 = vpop.permute.xlu0 %1530
    %v1544 = vsel %vm413, %v1436, %v1509
    %v1545 = vsel %vm413, %v1437, %v1511
    %v1546 = vsel %vm413, %v1438, %v1513
    %v1547 = vsel %vm413, %v1439, %v1515
    %v1548 = vsel %vm413, %v1440, %v1517
    %v1549 = vsel %vm413, %v1441, %v1519
    %v1550 = vsel %vm413, %v1442, %v1521
    %v1551 = vsel %vm413, %v1443, %v1523
    %v1552 = vsel %vm413, %v1444, %v1525
    %v1553 = vsel %vm413, %v1445, %v1527
    %v1554 = vsel %vm413, %v1446, %v1529
    %v1555 = vsel %vm413, %v1447, %v1531
    %v1556 = vadd.f32 %v1496, %v1544
    %v1557 = vadd.f32 %v1497, %v1545
    %v1558 = vadd.f32 %v1498, %v1546
    %v1559 = vadd.f32 %v1499, %v1547
    %v1560 = vadd.f32 %v1500, %v1548
    %v1561 = vadd.f32 %v1501, %v1549
    %v1562 = vadd.f32 %v1502, %v1550
    %v1563 = vadd.f32 %v1503, %v1551
    %v1564 = vadd.f32 %v1504, %v1552
    %v1565 = vadd.f32 %v1505, %v1553
    %v1566 = vadd.f32 %v1506, %v1554
    %v1567 = vadd.f32 %v1507, %v1555
    %1568 = vrot.lane.b32.xlu0 %v1436, 126
    %v1569 = vpop.permute.xlu0 %1568
    %1570 = vrot.lane.b32.xlu0 %v1437, 126
    %v1571 = vpop.permute.xlu0 %1570
    %1572 = vrot.lane.b32.xlu0 %v1438, 126
    %v1573 = vpop.permute.xlu0 %1572
    %1574 = vrot.lane.b32.xlu0 %v1439, 126
    %v1575 = vpop.permute.xlu0 %1574
    %1576 = vrot.lane.b32.xlu0 %v1440, 126
    %v1577 = vpop.permute.xlu0 %1576
    %1578 = vrot.lane.b32.xlu0 %v1441, 126
    %v1579 = vpop.permute.xlu0 %1578
    %1580 = vrot.lane.b32.xlu0 %v1442, 126
    %v1581 = vpop.permute.xlu0 %1580
    %1582 = vrot.lane.b32.xlu0 %v1443, 126
    %v1583 = vpop.permute.xlu0 %1582
    %1584 = vrot.lane.b32.xlu0 %v1444, 126
    %v1585 = vpop.permute.xlu0 %1584
    %1586 = vrot.lane.b32.xlu0 %v1445, 126
    %v1587 = vpop.permute.xlu0 %1586
    %1588 = vrot.lane.b32.xlu0 %v1446, 126
    %v1589 = vpop.permute.xlu0 %1588
    %1590 = vrot.lane.b32.xlu0 %v1447, 126
    %v1591 = vpop.permute.xlu0 %1590
    %v1604 = vsel %vm474, %v1569, %v1461
    %v1605 = vsel %vm474, %v1571, %v1463
    %v1606 = vsel %vm474, %v1573, %v1465
    %v1607 = vsel %vm474, %v1575, %v1467
    %v1608 = vsel %vm474, %v1577, %v1469
    %v1609 = vsel %vm474, %v1579, %v1471
    %v1610 = vsel %vm474, %v1581, %v1473
    %v1611 = vsel %vm474, %v1583, %v1475
    %v1612 = vsel %vm474, %v1585, %v1477
    %v1613 = vsel %vm474, %v1587, %v1479
    %v1614 = vsel %vm474, %v1589, %v1481
    %v1615 = vsel %vm474, %v1591, %v1483
    %v1616 = vsel %vm364, %v1604, %v1436
    %v1617 = vsel %vm364, %v1605, %v1437
    %v1618 = vsel %vm364, %v1606, %v1438
    %v1619 = vsel %vm364, %v1607, %v1439
    %v1620 = vsel %vm364, %v1608, %v1440
    %v1621 = vsel %vm364, %v1609, %v1441
    %v1622 = vsel %vm364, %v1610, %v1442
    %v1623 = vsel %vm364, %v1611, %v1443
    %v1624 = vsel %vm364, %v1612, %v1444
    %v1625 = vsel %vm364, %v1613, %v1445
    %v1626 = vsel %vm364, %v1614, %v1446
    %v1627 = vsel %vm364, %v1615, %v1447
    %1628 = vrot.lane.b32.xlu0 %v1436, 2
    %v1629 = vpop.permute.xlu0 %1628
    %1630 = vrot.lane.b32.xlu0 %v1437, 2
    %v1631 = vpop.permute.xlu0 %1630
    %1632 = vrot.lane.b32.xlu0 %v1438, 2
    %v1633 = vpop.permute.xlu0 %1632
    %1634 = vrot.lane.b32.xlu0 %v1439, 2
    %v1635 = vpop.permute.xlu0 %1634
    %1636 = vrot.lane.b32.xlu0 %v1440, 2
    %v1637 = vpop.permute.xlu0 %1636
    %1638 = vrot.lane.b32.xlu0 %v1441, 2
    %v1639 = vpop.permute.xlu0 %1638
    %1640 = vrot.lane.b32.xlu0 %v1442, 2
    %v1641 = vpop.permute.xlu0 %1640
    %1642 = vrot.lane.b32.xlu0 %v1443, 2
    %v1643 = vpop.permute.xlu0 %1642
    %1644 = vrot.lane.b32.xlu0 %v1444, 2
    %v1645 = vpop.permute.xlu0 %1644
    %1646 = vrot.lane.b32.xlu0 %v1445, 2
    %v1647 = vpop.permute.xlu0 %1646
    %1648 = vrot.lane.b32.xlu0 %v1446, 2
    %v1649 = vpop.permute.xlu0 %1648
    %1650 = vrot.lane.b32.xlu0 %v1447, 2
    %v1651 = vpop.permute.xlu0 %1650
    %v1664 = vsel %vm535, %v1544, %v1629
    %v1665 = vsel %vm535, %v1545, %v1631
    %v1666 = vsel %vm535, %v1546, %v1633
    %v1667 = vsel %vm535, %v1547, %v1635
    %v1668 = vsel %vm535, %v1548, %v1637
    %v1669 = vsel %vm535, %v1549, %v1639
    %v1670 = vsel %vm535, %v1550, %v1641
    %v1671 = vsel %vm535, %v1551, %v1643
    %v1672 = vsel %vm535, %v1552, %v1645
    %v1673 = vsel %vm535, %v1553, %v1647
    %v1674 = vsel %vm535, %v1554, %v1649
    %v1675 = vsel %vm535, %v1555, %v1651
    %v1676 = vadd.f32 %v1616, %v1664
    %v1677 = vadd.f32 %v1617, %v1665
    %v1678 = vadd.f32 %v1618, %v1666
    %v1679 = vadd.f32 %v1619, %v1667
    %v1680 = vadd.f32 %v1620, %v1668
    %v1681 = vadd.f32 %v1621, %v1669
    %v1682 = vadd.f32 %v1622, %v1670
    %v1683 = vadd.f32 %v1623, %v1671
    %v1684 = vadd.f32 %v1624, %v1672
    %v1685 = vadd.f32 %v1625, %v1673
    %v1686 = vadd.f32 %v1626, %v1674
    %v1687 = vadd.f32 %v1627, %v1675
    %v1688 = vmul.f32 %v1436, 0.4
    %v1689 = vmul.f32 %v1437, 0.4
    %v1690 = vmul.f32 %v1438, 0.4
    %v1691 = vmul.f32 %v1439, 0.4
    %v1692 = vmul.f32 %v1440, 0.4
    %v1693 = vmul.f32 %v1441, 0.4
    %v1694 = vmul.f32 %v1442, 0.4
    %v1695 = vmul.f32 %v1443, 0.4
    %v1696 = vmul.f32 %v1444, 0.4
    %v1697 = vmul.f32 %v1445, 0.4
    %v1698 = vmul.f32 %v1446, 0.4
    %v1699 = vmul.f32 %v1447, 0.4
    %v1700 = vmul.f32 %v1556, 0.25
    %v1701 = vmul.f32 %v1557, 0.25
    %v1702 = vmul.f32 %v1558, 0.25
    %v1703 = vmul.f32 %v1559, 0.25
    %v1704 = vmul.f32 %v1560, 0.25
    %v1705 = vmul.f32 %v1561, 0.25
    %v1706 = vmul.f32 %v1562, 0.25
    %v1707 = vmul.f32 %v1563, 0.25
    %v1708 = vmul.f32 %v1564, 0.25
    %v1709 = vmul.f32 %v1565, 0.25
    %v1710 = vmul.f32 %v1566, 0.25
    %v1711 = vmul.f32 %v1567, 0.25
    %v1712 = vadd.f32 %v1688, %v1700
    %v1713 = vadd.f32 %v1689, %v1701
    %v1714 = vadd.f32 %v1690, %v1702
    %v1715 = vadd.f32 %v1691, %v1703
    %v1716 = vadd.f32 %v1692, %v1704
    %v1717 = vadd.f32 %v1693, %v1705
    %v1718 = vadd.f32 %v1694, %v1706
    %v1719 = vadd.f32 %v1695, %v1707
    %v1720 = vadd.f32 %v1696, %v1708
    %v1721 = vadd.f32 %v1697, %v1709
    %v1722 = vadd.f32 %v1698, %v1710
    %v1723 = vadd.f32 %v1699, %v1711
    %v1724 = vmul.f32 %v1676, 0.05
    %v1725 = vmul.f32 %v1677, 0.05
    %v1726 = vmul.f32 %v1678, 0.05
    %v1727 = vmul.f32 %v1679, 0.05
    %v1728 = vmul.f32 %v1680, 0.05
    %v1729 = vmul.f32 %v1681, 0.05
    %v1730 = vmul.f32 %v1682, 0.05
    %v1731 = vmul.f32 %v1683, 0.05
    %v1732 = vmul.f32 %v1684, 0.05
    %v1733 = vmul.f32 %v1685, 0.05
    %v1734 = vmul.f32 %v1686, 0.05
    %v1735 = vmul.f32 %v1687, 0.05
    %v1736 = vadd.f32 %v1712, %v1724
    %v1737 = vadd.f32 %v1713, %v1725
    %v1738 = vadd.f32 %v1714, %v1726
    %v1739 = vadd.f32 %v1715, %v1727
    %v1740 = vadd.f32 %v1716, %v1728
    %v1741 = vadd.f32 %v1717, %v1729
    %v1742 = vadd.f32 %v1718, %v1730
    %v1743 = vadd.f32 %v1719, %v1731
    %v1744 = vadd.f32 %v1720, %v1732
    %v1745 = vadd.f32 %v1721, %v1733
    %v1746 = vadd.f32 %v1722, %v1734
    %v1747 = vadd.f32 %v1723, %v1735
    %v1748 = vmul.f32 %v1736, %v52
    %v1749 = vmul.f32 %v1737, %v53
    %v1750 = vmul.f32 %v1738, %v52
    %v1751 = vmul.f32 %v1739, %v53
    %v1752 = vmul.f32 %v1740, %v52
    %v1753 = vmul.f32 %v1741, %v53
    %v1754 = vmul.f32 %v1742, %v52
    %v1755 = vmul.f32 %v1743, %v53
    %v1756 = vmul.f32 %v1744, %v52
    %v1757 = vmul.f32 %v1745, %v53
    %v1758 = vmul.f32 %v1746, %v52
    %v1759 = vmul.f32 %v1747, %v53
    %v1772 = vrot.slane %v1748, 1
    %v1773 = vrot.slane %v1749, 1
    %v1774 = vsel %vm78, %v1772, %v1773
    %v1775 = vrot.slane %v1750, 1
    %v1776 = vrot.slane %v1751, 1
    %v1777 = vsel %vm78, %v1775, %v1776
    %v1778 = vrot.slane %v1752, 1
    %v1779 = vrot.slane %v1753, 1
    %v1780 = vsel %vm78, %v1778, %v1779
    %v1781 = vrot.slane %v1754, 1
    %v1782 = vrot.slane %v1755, 1
    %v1783 = vsel %vm78, %v1781, %v1782
    %v1784 = vrot.slane %v1756, 1
    %v1785 = vrot.slane %v1757, 1
    %v1786 = vsel %vm78, %v1784, %v1785
    %v1787 = vrot.slane %v1758, 1
    %v1788 = vrot.slane %v1759, 1
    %v1789 = vsel %vm78, %v1787, %v1788
    %v1802 = vsel %vm78, %v1773, %v1749
    %v1803 = vsel %vm78, %v1776, %v1751
    %v1804 = vsel %vm78, %v1779, %v1753
    %v1805 = vsel %vm78, %v1782, %v1755
    %v1806 = vsel %vm78, %v1785, %v1757
    %v1807 = vsel %vm78, %v1788, %v1759
    %v1808 = vrot.slane %v1748, 7
    %v1809 = vrot.slane %v1749, 7
    %v1810 = vsel %vm115, %v1808, %v1809
    %v1811 = vrot.slane %v1750, 7
    %v1812 = vrot.slane %v1751, 7
    %v1813 = vsel %vm115, %v1811, %v1812
    %v1814 = vrot.slane %v1752, 7
    %v1815 = vrot.slane %v1753, 7
    %v1816 = vsel %vm115, %v1814, %v1815
    %v1817 = vrot.slane %v1754, 7
    %v1818 = vrot.slane %v1755, 7
    %v1819 = vsel %vm115, %v1817, %v1818
    %v1820 = vrot.slane %v1756, 7
    %v1821 = vrot.slane %v1757, 7
    %v1822 = vsel %vm115, %v1820, %v1821
    %v1823 = vrot.slane %v1758, 7
    %v1824 = vrot.slane %v1759, 7
    %v1825 = vsel %vm115, %v1823, %v1824
    %v1838 = vsel %vm115, %v1748, %v1808
    %v1839 = vsel %vm115, %v1750, %v1811
    %v1840 = vsel %vm115, %v1752, %v1814
    %v1841 = vsel %vm115, %v1754, %v1817
    %v1842 = vsel %vm115, %v1756, %v1820
    %v1843 = vsel %vm115, %v1758, %v1823
    %v1844 = vadd.f32 %v1774, %v1838
    %v1845 = vadd.f32 %v1802, %v1810
    %v1846 = vadd.f32 %v1777, %v1839
    %v1847 = vadd.f32 %v1803, %v1813
    %v1848 = vadd.f32 %v1780, %v1840
    %v1849 = vadd.f32 %v1804, %v1816
    %v1850 = vadd.f32 %v1783, %v1841
    %v1851 = vadd.f32 %v1805, %v1819
    %v1852 = vadd.f32 %v1786, %v1842
    %v1853 = vadd.f32 %v1806, %v1822
    %v1854 = vadd.f32 %v1789, %v1843
    %v1855 = vadd.f32 %v1807, %v1825
    %v1856 = vrot.slane %v1748, 2
    %v1857 = vrot.slane %v1749, 2
    %v1858 = vsel %vm164, %v1856, %v1857
    %v1859 = vrot.slane %v1750, 2
    %v1860 = vrot.slane %v1751, 2
    %v1861 = vsel %vm164, %v1859, %v1860
    %v1862 = vrot.slane %v1752, 2
    %v1863 = vrot.slane %v1753, 2
    %v1864 = vsel %vm164, %v1862, %v1863
    %v1865 = vrot.slane %v1754, 2
    %v1866 = vrot.slane %v1755, 2
    %v1867 = vsel %vm164, %v1865, %v1866
    %v1868 = vrot.slane %v1756, 2
    %v1869 = vrot.slane %v1757, 2
    %v1870 = vsel %vm164, %v1868, %v1869
    %v1871 = vrot.slane %v1758, 2
    %v1872 = vrot.slane %v1759, 2
    %v1873 = vsel %vm164, %v1871, %v1872
    %v1886 = vsel %vm164, %v1857, %v1773
    %v1887 = vsel %vm164, %v1860, %v1776
    %v1888 = vsel %vm164, %v1863, %v1779
    %v1889 = vsel %vm164, %v1866, %v1782
    %v1890 = vsel %vm164, %v1869, %v1785
    %v1891 = vsel %vm164, %v1872, %v1788
    %v1892 = vsel %vm78, %v1886, %v1749
    %v1893 = vsel %vm78, %v1887, %v1751
    %v1894 = vsel %vm78, %v1888, %v1753
    %v1895 = vsel %vm78, %v1889, %v1755
    %v1896 = vsel %vm78, %v1890, %v1757
    %v1897 = vsel %vm78, %v1891, %v1759
    %v1898 = vrot.slane %v1748, 6
    %v1899 = vrot.slane %v1749, 6
    %v1900 = vsel %vm207, %v1898, %v1899
    %v1901 = vrot.slane %v1750, 6
    %v1902 = vrot.slane %v1751, 6
    %v1903 = vsel %vm207, %v1901, %v1902
    %v1904 = vrot.slane %v1752, 6
    %v1905 = vrot.slane %v1753, 6
    %v1906 = vsel %vm207, %v1904, %v1905
    %v1907 = vrot.slane %v1754, 6
    %v1908 = vrot.slane %v1755, 6
    %v1909 = vsel %vm207, %v1907, %v1908
    %v1910 = vrot.slane %v1756, 6
    %v1911 = vrot.slane %v1757, 6
    %v1912 = vsel %vm207, %v1910, %v1911
    %v1913 = vrot.slane %v1758, 6
    %v1914 = vrot.slane %v1759, 6
    %v1915 = vsel %vm207, %v1913, %v1914
    %v1928 = vsel %vm207, %v1838, %v1898
    %v1929 = vsel %vm207, %v1839, %v1901
    %v1930 = vsel %vm207, %v1840, %v1904
    %v1931 = vsel %vm207, %v1841, %v1907
    %v1932 = vsel %vm207, %v1842, %v1910
    %v1933 = vsel %vm207, %v1843, %v1913
    %v1934 = vadd.f32 %v1858, %v1928
    %v1935 = vadd.f32 %v1892, %v1900
    %v1936 = vadd.f32 %v1861, %v1929
    %v1937 = vadd.f32 %v1893, %v1903
    %v1938 = vadd.f32 %v1864, %v1930
    %v1939 = vadd.f32 %v1894, %v1906
    %v1940 = vadd.f32 %v1867, %v1931
    %v1941 = vadd.f32 %v1895, %v1909
    %v1942 = vadd.f32 %v1870, %v1932
    %v1943 = vadd.f32 %v1896, %v1912
    %v1944 = vadd.f32 %v1873, %v1933
    %v1945 = vadd.f32 %v1897, %v1915
    %v1946 = vmul.f32 %v1748, 0.4
    %v1947 = vmul.f32 %v1749, 0.4
    %v1948 = vmul.f32 %v1750, 0.4
    %v1949 = vmul.f32 %v1751, 0.4
    %v1950 = vmul.f32 %v1752, 0.4
    %v1951 = vmul.f32 %v1753, 0.4
    %v1952 = vmul.f32 %v1754, 0.4
    %v1953 = vmul.f32 %v1755, 0.4
    %v1954 = vmul.f32 %v1756, 0.4
    %v1955 = vmul.f32 %v1757, 0.4
    %v1956 = vmul.f32 %v1758, 0.4
    %v1957 = vmul.f32 %v1759, 0.4
    %v1958 = vmul.f32 %v1844, 0.25
    %v1959 = vmul.f32 %v1845, 0.25
    %v1960 = vmul.f32 %v1846, 0.25
    %v1961 = vmul.f32 %v1847, 0.25
    %v1962 = vmul.f32 %v1848, 0.25
    %v1963 = vmul.f32 %v1849, 0.25
    %v1964 = vmul.f32 %v1850, 0.25
    %v1965 = vmul.f32 %v1851, 0.25
    %v1966 = vmul.f32 %v1852, 0.25
    %v1967 = vmul.f32 %v1853, 0.25
    %v1968 = vmul.f32 %v1854, 0.25
    %v1969 = vmul.f32 %v1855, 0.25
    %v1970 = vadd.f32 %v1946, %v1958
    %v1971 = vadd.f32 %v1947, %v1959
    %v1972 = vadd.f32 %v1948, %v1960
    %v1973 = vadd.f32 %v1949, %v1961
    %v1974 = vadd.f32 %v1950, %v1962
    %v1975 = vadd.f32 %v1951, %v1963
    %v1976 = vadd.f32 %v1952, %v1964
    %v1977 = vadd.f32 %v1953, %v1965
    %v1978 = vadd.f32 %v1954, %v1966
    %v1979 = vadd.f32 %v1955, %v1967
    %v1980 = vadd.f32 %v1956, %v1968
    %v1981 = vadd.f32 %v1957, %v1969
    %v1982 = vmul.f32 %v1934, 0.05
    %v1983 = vmul.f32 %v1935, 0.05
    %v1984 = vmul.f32 %v1936, 0.05
    %v1985 = vmul.f32 %v1937, 0.05
    %v1986 = vmul.f32 %v1938, 0.05
    %v1987 = vmul.f32 %v1939, 0.05
    %v1988 = vmul.f32 %v1940, 0.05
    %v1989 = vmul.f32 %v1941, 0.05
    %v1990 = vmul.f32 %v1942, 0.05
    %v1991 = vmul.f32 %v1943, 0.05
    %v1992 = vmul.f32 %v1944, 0.05
    %v1993 = vmul.f32 %v1945, 0.05
    %v1994 = vadd.f32 %v1970, %v1982
    %v1995 = vadd.f32 %v1971, %v1983
    %v1996 = vadd.f32 %v1972, %v1984
    %v1997 = vadd.f32 %v1973, %v1985
    %v1998 = vadd.f32 %v1974, %v1986
    %v1999 = vadd.f32 %v1975, %v1987
    %v2000 = vadd.f32 %v1976, %v1988
    %v2001 = vadd.f32 %v1977, %v1989
    %v2002 = vadd.f32 %v1978, %v1990
    %v2003 = vadd.f32 %v1979, %v1991
    %v2004 = vadd.f32 %v1980, %v1992
    %v2005 = vadd.f32 %v1981, %v1993
    %2018 = vrot.lane.b32.xlu0 %v1994, 127
    %v2019 = vpop.permute.xlu0 %2018
    %2020 = vrot.lane.b32.xlu0 %v1995, 127
    %v2021 = vpop.permute.xlu0 %2020
    %2022 = vrot.lane.b32.xlu0 %v1996, 127
    %v2023 = vpop.permute.xlu0 %2022
    %2024 = vrot.lane.b32.xlu0 %v1997, 127
    %v2025 = vpop.permute.xlu0 %2024
    %2026 = vrot.lane.b32.xlu0 %v1998, 127
    %v2027 = vpop.permute.xlu0 %2026
    %2028 = vrot.lane.b32.xlu0 %v1999, 127
    %v2029 = vpop.permute.xlu0 %2028
    %2030 = vrot.lane.b32.xlu0 %v2000, 127
    %v2031 = vpop.permute.xlu0 %2030
    %2032 = vrot.lane.b32.xlu0 %v2001, 127
    %v2033 = vpop.permute.xlu0 %2032
    %2034 = vrot.lane.b32.xlu0 %v2002, 127
    %v2035 = vpop.permute.xlu0 %2034
    %2036 = vrot.lane.b32.xlu0 %v2003, 127
    %v2037 = vpop.permute.xlu0 %2036
    %2038 = vrot.lane.b32.xlu0 %v2004, 127
    %v2039 = vpop.permute.xlu0 %2038
    %2040 = vrot.lane.b32.xlu0 %v2005, 127
    %v2041 = vpop.permute.xlu0 %2040
    %v2054 = vsel %vm364, %v2019, %v1994
    %v2055 = vsel %vm364, %v2021, %v1995
    %v2056 = vsel %vm364, %v2023, %v1996
    %v2057 = vsel %vm364, %v2025, %v1997
    %v2058 = vsel %vm364, %v2027, %v1998
    %v2059 = vsel %vm364, %v2029, %v1999
    %v2060 = vsel %vm364, %v2031, %v2000
    %v2061 = vsel %vm364, %v2033, %v2001
    %v2062 = vsel %vm364, %v2035, %v2002
    %v2063 = vsel %vm364, %v2037, %v2003
    %v2064 = vsel %vm364, %v2039, %v2004
    %v2065 = vsel %vm364, %v2041, %v2005
    %2066 = vrot.lane.b32.xlu0 %v1994, 1
    %v2067 = vpop.permute.xlu0 %2066
    %2068 = vrot.lane.b32.xlu0 %v1995, 1
    %v2069 = vpop.permute.xlu0 %2068
    %2070 = vrot.lane.b32.xlu0 %v1996, 1
    %v2071 = vpop.permute.xlu0 %2070
    %2072 = vrot.lane.b32.xlu0 %v1997, 1
    %v2073 = vpop.permute.xlu0 %2072
    %2074 = vrot.lane.b32.xlu0 %v1998, 1
    %v2075 = vpop.permute.xlu0 %2074
    %2076 = vrot.lane.b32.xlu0 %v1999, 1
    %v2077 = vpop.permute.xlu0 %2076
    %2078 = vrot.lane.b32.xlu0 %v2000, 1
    %v2079 = vpop.permute.xlu0 %2078
    %2080 = vrot.lane.b32.xlu0 %v2001, 1
    %v2081 = vpop.permute.xlu0 %2080
    %2082 = vrot.lane.b32.xlu0 %v2002, 1
    %v2083 = vpop.permute.xlu0 %2082
    %2084 = vrot.lane.b32.xlu0 %v2003, 1
    %v2085 = vpop.permute.xlu0 %2084
    %2086 = vrot.lane.b32.xlu0 %v2004, 1
    %v2087 = vpop.permute.xlu0 %2086
    %2088 = vrot.lane.b32.xlu0 %v2005, 1
    %v2089 = vpop.permute.xlu0 %2088
    %v2102 = vsel %vm413, %v1994, %v2067
    %v2103 = vsel %vm413, %v1995, %v2069
    %v2104 = vsel %vm413, %v1996, %v2071
    %v2105 = vsel %vm413, %v1997, %v2073
    %v2106 = vsel %vm413, %v1998, %v2075
    %v2107 = vsel %vm413, %v1999, %v2077
    %v2108 = vsel %vm413, %v2000, %v2079
    %v2109 = vsel %vm413, %v2001, %v2081
    %v2110 = vsel %vm413, %v2002, %v2083
    %v2111 = vsel %vm413, %v2003, %v2085
    %v2112 = vsel %vm413, %v2004, %v2087
    %v2113 = vsel %vm413, %v2005, %v2089
    %v2114 = vadd.f32 %v2054, %v2102
    %v2115 = vadd.f32 %v2055, %v2103
    %v2116 = vadd.f32 %v2056, %v2104
    %v2117 = vadd.f32 %v2057, %v2105
    %v2118 = vadd.f32 %v2058, %v2106
    %v2119 = vadd.f32 %v2059, %v2107
    %v2120 = vadd.f32 %v2060, %v2108
    %v2121 = vadd.f32 %v2061, %v2109
    %v2122 = vadd.f32 %v2062, %v2110
    %v2123 = vadd.f32 %v2063, %v2111
    %v2124 = vadd.f32 %v2064, %v2112
    %v2125 = vadd.f32 %v2065, %v2113
    %2126 = vrot.lane.b32.xlu0 %v1994, 126
    %v2127 = vpop.permute.xlu0 %2126
    %2128 = vrot.lane.b32.xlu0 %v1995, 126
    %v2129 = vpop.permute.xlu0 %2128
    %2130 = vrot.lane.b32.xlu0 %v1996, 126
    %v2131 = vpop.permute.xlu0 %2130
    %2132 = vrot.lane.b32.xlu0 %v1997, 126
    %v2133 = vpop.permute.xlu0 %2132
    %2134 = vrot.lane.b32.xlu0 %v1998, 126
    %v2135 = vpop.permute.xlu0 %2134
    %2136 = vrot.lane.b32.xlu0 %v1999, 126
    %v2137 = vpop.permute.xlu0 %2136
    %2138 = vrot.lane.b32.xlu0 %v2000, 126
    %v2139 = vpop.permute.xlu0 %2138
    %2140 = vrot.lane.b32.xlu0 %v2001, 126
    %v2141 = vpop.permute.xlu0 %2140
    %2142 = vrot.lane.b32.xlu0 %v2002, 126
    %v2143 = vpop.permute.xlu0 %2142
    %2144 = vrot.lane.b32.xlu0 %v2003, 126
    %v2145 = vpop.permute.xlu0 %2144
    %2146 = vrot.lane.b32.xlu0 %v2004, 126
    %v2147 = vpop.permute.xlu0 %2146
    %2148 = vrot.lane.b32.xlu0 %v2005, 126
    %v2149 = vpop.permute.xlu0 %2148
    %v2162 = vsel %vm474, %v2127, %v2019
    %v2163 = vsel %vm474, %v2129, %v2021
    %v2164 = vsel %vm474, %v2131, %v2023
    %v2165 = vsel %vm474, %v2133, %v2025
    %v2166 = vsel %vm474, %v2135, %v2027
    %v2167 = vsel %vm474, %v2137, %v2029
    %v2168 = vsel %vm474, %v2139, %v2031
    %v2169 = vsel %vm474, %v2141, %v2033
    %v2170 = vsel %vm474, %v2143, %v2035
    %v2171 = vsel %vm474, %v2145, %v2037
    %v2172 = vsel %vm474, %v2147, %v2039
    %v2173 = vsel %vm474, %v2149, %v2041
    %v2174 = vsel %vm364, %v2162, %v1994
    %v2175 = vsel %vm364, %v2163, %v1995
    %v2176 = vsel %vm364, %v2164, %v1996
    %v2177 = vsel %vm364, %v2165, %v1997
    %v2178 = vsel %vm364, %v2166, %v1998
    %v2179 = vsel %vm364, %v2167, %v1999
    %v2180 = vsel %vm364, %v2168, %v2000
    %v2181 = vsel %vm364, %v2169, %v2001
    %v2182 = vsel %vm364, %v2170, %v2002
    %v2183 = vsel %vm364, %v2171, %v2003
    %v2184 = vsel %vm364, %v2172, %v2004
    %v2185 = vsel %vm364, %v2173, %v2005
    %2186 = vrot.lane.b32.xlu0 %v1994, 2
    %v2187 = vpop.permute.xlu0 %2186
    %2188 = vrot.lane.b32.xlu0 %v1995, 2
    %v2189 = vpop.permute.xlu0 %2188
    %2190 = vrot.lane.b32.xlu0 %v1996, 2
    %v2191 = vpop.permute.xlu0 %2190
    %2192 = vrot.lane.b32.xlu0 %v1997, 2
    %v2193 = vpop.permute.xlu0 %2192
    %2194 = vrot.lane.b32.xlu0 %v1998, 2
    %v2195 = vpop.permute.xlu0 %2194
    %2196 = vrot.lane.b32.xlu0 %v1999, 2
    %v2197 = vpop.permute.xlu0 %2196
    %2198 = vrot.lane.b32.xlu0 %v2000, 2
    %v2199 = vpop.permute.xlu0 %2198
    %2200 = vrot.lane.b32.xlu0 %v2001, 2
    %v2201 = vpop.permute.xlu0 %2200
    %2202 = vrot.lane.b32.xlu0 %v2002, 2
    %v2203 = vpop.permute.xlu0 %2202
    %2204 = vrot.lane.b32.xlu0 %v2003, 2
    %v2205 = vpop.permute.xlu0 %2204
    %2206 = vrot.lane.b32.xlu0 %v2004, 2
    %v2207 = vpop.permute.xlu0 %2206
    %2208 = vrot.lane.b32.xlu0 %v2005, 2
    %v2209 = vpop.permute.xlu0 %2208
    %v2222 = vsel %vm535, %v2102, %v2187
    %v2223 = vsel %vm535, %v2103, %v2189
    %v2224 = vsel %vm535, %v2104, %v2191
    %v2225 = vsel %vm535, %v2105, %v2193
    %v2226 = vsel %vm535, %v2106, %v2195
    %v2227 = vsel %vm535, %v2107, %v2197
    %v2228 = vsel %vm535, %v2108, %v2199
    %v2229 = vsel %vm535, %v2109, %v2201
    %v2230 = vsel %vm535, %v2110, %v2203
    %v2231 = vsel %vm535, %v2111, %v2205
    %v2232 = vsel %vm535, %v2112, %v2207
    %v2233 = vsel %vm535, %v2113, %v2209
    %v2234 = vadd.f32 %v2174, %v2222
    %v2235 = vadd.f32 %v2175, %v2223
    %v2236 = vadd.f32 %v2176, %v2224
    %v2237 = vadd.f32 %v2177, %v2225
    %v2238 = vadd.f32 %v2178, %v2226
    %v2239 = vadd.f32 %v2179, %v2227
    %v2240 = vadd.f32 %v2180, %v2228
    %v2241 = vadd.f32 %v2181, %v2229
    %v2242 = vadd.f32 %v2182, %v2230
    %v2243 = vadd.f32 %v2183, %v2231
    %v2244 = vadd.f32 %v2184, %v2232
    %v2245 = vadd.f32 %v2185, %v2233
    %v2246 = vmul.f32 %v1994, 0.4
    %v2247 = vmul.f32 %v1995, 0.4
    %v2248 = vmul.f32 %v1996, 0.4
    %v2249 = vmul.f32 %v1997, 0.4
    %v2250 = vmul.f32 %v1998, 0.4
    %v2251 = vmul.f32 %v1999, 0.4
    %v2252 = vmul.f32 %v2000, 0.4
    %v2253 = vmul.f32 %v2001, 0.4
    %v2254 = vmul.f32 %v2002, 0.4
    %v2255 = vmul.f32 %v2003, 0.4
    %v2256 = vmul.f32 %v2004, 0.4
    %v2257 = vmul.f32 %v2005, 0.4
    %v2258 = vmul.f32 %v2114, 0.25
    %v2259 = vmul.f32 %v2115, 0.25
    %v2260 = vmul.f32 %v2116, 0.25
    %v2261 = vmul.f32 %v2117, 0.25
    %v2262 = vmul.f32 %v2118, 0.25
    %v2263 = vmul.f32 %v2119, 0.25
    %v2264 = vmul.f32 %v2120, 0.25
    %v2265 = vmul.f32 %v2121, 0.25
    %v2266 = vmul.f32 %v2122, 0.25
    %v2267 = vmul.f32 %v2123, 0.25
    %v2268 = vmul.f32 %v2124, 0.25
    %v2269 = vmul.f32 %v2125, 0.25
    %v2270 = vadd.f32 %v2246, %v2258
    %v2271 = vadd.f32 %v2247, %v2259
    %v2272 = vadd.f32 %v2248, %v2260
    %v2273 = vadd.f32 %v2249, %v2261
    %v2274 = vadd.f32 %v2250, %v2262
    %v2275 = vadd.f32 %v2251, %v2263
    %v2276 = vadd.f32 %v2252, %v2264
    %v2277 = vadd.f32 %v2253, %v2265
    %v2278 = vadd.f32 %v2254, %v2266
    %v2279 = vadd.f32 %v2255, %v2267
    %v2280 = vadd.f32 %v2256, %v2268
    %v2281 = vadd.f32 %v2257, %v2269
    %v2282 = vmul.f32 %v2234, 0.05
    %v2283 = vmul.f32 %v2235, 0.05
    %v2284 = vmul.f32 %v2236, 0.05
    %v2285 = vmul.f32 %v2237, 0.05
    %v2286 = vmul.f32 %v2238, 0.05
    %v2287 = vmul.f32 %v2239, 0.05
    %v2288 = vmul.f32 %v2240, 0.05
    %v2289 = vmul.f32 %v2241, 0.05
    %v2290 = vmul.f32 %v2242, 0.05
    %v2291 = vmul.f32 %v2243, 0.05
    %v2292 = vmul.f32 %v2244, 0.05
    %v2293 = vmul.f32 %v2245, 0.05
    %v2294 = vadd.f32 %v2270, %v2282
    %v2295 = vadd.f32 %v2271, %v2283
    %v2296 = vadd.f32 %v2272, %v2284
    %v2297 = vadd.f32 %v2273, %v2285
    %v2298 = vadd.f32 %v2274, %v2286
    %v2299 = vadd.f32 %v2275, %v2287
    %v2300 = vadd.f32 %v2276, %v2288
    %v2301 = vadd.f32 %v2277, %v2289
    %v2302 = vadd.f32 %v2278, %v2290
    %v2303 = vadd.f32 %v2279, %v2291
    %v2304 = vadd.f32 %v2280, %v2292
    %v2305 = vadd.f32 %v2281, %v2293
    %v2306 = vsub.f32 %v1190, %v2294
    %v2307 = vsub.f32 %v1191, %v2295
    %v2308 = vsub.f32 %v1192, %v2296
    %v2309 = vsub.f32 %v1193, %v2297
    %v2310 = vsub.f32 %v1194, %v2298
    %v2311 = vsub.f32 %v1195, %v2299
    %v2312 = vsub.f32 %v1196, %v2300
    %v2313 = vsub.f32 %v1197, %v2301
    %v2314 = vsub.f32 %v1198, %v2302
    %v2315 = vsub.f32 %v1199, %v2303
    %v2316 = vsub.f32 %v1200, %v2304
    %v2317 = vsub.f32 %v1201, %v2305
    %v2318 = vsub.f32 %v1178, %v2306
    %v2319 = vsub.f32 %v1179, %v2307
    %v2320 = vsub.f32 %v1180, %v2308
    %v2321 = vsub.f32 %v1181, %v2309
    %v2322 = vsub.f32 %v1182, %v2310
    %v2323 = vsub.f32 %v1183, %v2311
    %v2324 = vsub.f32 %v1184, %v2312
    %v2325 = vsub.f32 %v1185, %v2313
    %v2326 = vsub.f32 %v1186, %v2314
    %v2327 = vsub.f32 %v1187, %v2315
    %v2328 = vsub.f32 %v1188, %v2316
    %v2329 = vsub.f32 %v1189, %v2317
    %v2330 = vmul.f32 %v2318, %v2318
    %v2331 = vmul.f32 %v2319, %v2319
    %v2332 = vmul.f32 %v2320, %v2320
    %v2333 = vmul.f32 %v2321, %v2321
    %v2334 = vmul.f32 %v2322, %v2322
    %v2335 = vmul.f32 %v2323, %v2323
    %v2336 = vmul.f32 %v2324, %v2324
    %v2337 = vmul.f32 %v2325, %v2325
    %v2338 = vmul.f32 %v2326, %v2326
    %v2339 = vmul.f32 %v2327, %v2327
    %v2340 = vmul.f32 %v2328, %v2328
    %v2341 = vmul.f32 %v2329, %v2329
    %v2342 = vadd.f32 %v2330, 1e-06
    %v2343 = vadd.f32 %v2331, 1e-06
    %v2344 = vadd.f32 %v2332, 1e-06
    %v2345 = vadd.f32 %v2333, 1e-06
    %v2346 = vadd.f32 %v2334, 1e-06
    %v2347 = vadd.f32 %v2335, 1e-06
    %v2348 = vadd.f32 %v2336, 1e-06
    %v2349 = vadd.f32 %v2337, 1e-06
    %v2350 = vadd.f32 %v2338, 1e-06
    %v2351 = vadd.f32 %v2339, 1e-06
    %v2352 = vadd.f32 %v2340, 1e-06
    %v2353 = vadd.f32 %v2341, 1e-06
    %v2354 = vrsqrt.pop %v2342
    %v2355 = vmul.f32 %v2342, %v2354
    %vm2356 = vcmp.eq.f32.partialorder %v2342, inf
    %v2357 = vsel %vm2356, %v2342, %v2355
    %vm2358 = vcmp.eq.f32.partialorder %v2342, 0.0
    %v2359 = vand.u32 %v2342, 2147483648
    %v2360 = vsel %vm2358, %v2359, %v2357
    %v2361 = vrsqrt.pop %v2343
    %v2362 = vmul.f32 %v2343, %v2361
    %vm2363 = vcmp.eq.f32.partialorder %v2343, inf
    %v2364 = vsel %vm2363, %v2343, %v2362
    %vm2365 = vcmp.eq.f32.partialorder %v2343, 0.0
    %v2366 = vand.u32 %v2343, 2147483648
    %v2367 = vsel %vm2365, %v2366, %v2364
    %v2368 = vrsqrt.pop %v2344
    %v2369 = vmul.f32 %v2344, %v2368
    %vm2370 = vcmp.eq.f32.partialorder %v2344, inf
    %v2371 = vsel %vm2370, %v2344, %v2369
    %vm2372 = vcmp.eq.f32.partialorder %v2344, 0.0
    %v2373 = vand.u32 %v2344, 2147483648
    %v2374 = vsel %vm2372, %v2373, %v2371
    %v2375 = vrsqrt.pop %v2345
    %v2376 = vmul.f32 %v2345, %v2375
    %vm2377 = vcmp.eq.f32.partialorder %v2345, inf
    %v2378 = vsel %vm2377, %v2345, %v2376
    %vm2379 = vcmp.eq.f32.partialorder %v2345, 0.0
    %v2380 = vand.u32 %v2345, 2147483648
    %v2381 = vsel %vm2379, %v2380, %v2378
    %v2382 = vrsqrt.pop %v2346
    %v2383 = vmul.f32 %v2346, %v2382
    %vm2384 = vcmp.eq.f32.partialorder %v2346, inf
    %v2385 = vsel %vm2384, %v2346, %v2383
    %vm2386 = vcmp.eq.f32.partialorder %v2346, 0.0
    %v2387 = vand.u32 %v2346, 2147483648
    %v2388 = vsel %vm2386, %v2387, %v2385
    %v2389 = vrsqrt.pop %v2347
    %v2390 = vmul.f32 %v2347, %v2389
    %vm2391 = vcmp.eq.f32.partialorder %v2347, inf
    %v2392 = vsel %vm2391, %v2347, %v2390
    %vm2393 = vcmp.eq.f32.partialorder %v2347, 0.0
    %v2394 = vand.u32 %v2347, 2147483648
    %v2395 = vsel %vm2393, %v2394, %v2392
    %v2396 = vrsqrt.pop %v2348
    %v2397 = vmul.f32 %v2348, %v2396
    %vm2398 = vcmp.eq.f32.partialorder %v2348, inf
    %v2399 = vsel %vm2398, %v2348, %v2397
    %vm2400 = vcmp.eq.f32.partialorder %v2348, 0.0
    %v2401 = vand.u32 %v2348, 2147483648
    %v2402 = vsel %vm2400, %v2401, %v2399
    %v2403 = vrsqrt.pop %v2349
    %v2404 = vmul.f32 %v2349, %v2403
    %vm2405 = vcmp.eq.f32.partialorder %v2349, inf
    %v2406 = vsel %vm2405, %v2349, %v2404
    %vm2407 = vcmp.eq.f32.partialorder %v2349, 0.0
    %v2408 = vand.u32 %v2349, 2147483648
    %v2409 = vsel %vm2407, %v2408, %v2406
    %v2410 = vrsqrt.pop %v2350
    %v2411 = vmul.f32 %v2350, %v2410
    %vm2412 = vcmp.eq.f32.partialorder %v2350, inf
    %v2413 = vsel %vm2412, %v2350, %v2411
    %vm2414 = vcmp.eq.f32.partialorder %v2350, 0.0
    %v2415 = vand.u32 %v2350, 2147483648
    %v2416 = vsel %vm2414, %v2415, %v2413
    %v2417 = vrsqrt.pop %v2351
    %v2418 = vmul.f32 %v2351, %v2417
    %vm2419 = vcmp.eq.f32.partialorder %v2351, inf
    %v2420 = vsel %vm2419, %v2351, %v2418
    %vm2421 = vcmp.eq.f32.partialorder %v2351, 0.0
    %v2422 = vand.u32 %v2351, 2147483648
    %v2423 = vsel %vm2421, %v2422, %v2420
    %v2424 = vrsqrt.pop %v2352
    %v2425 = vmul.f32 %v2352, %v2424
    %vm2426 = vcmp.eq.f32.partialorder %v2352, inf
    %v2427 = vsel %vm2426, %v2352, %v2425
    %vm2428 = vcmp.eq.f32.partialorder %v2352, 0.0
    %v2429 = vand.u32 %v2352, 2147483648
    %v2430 = vsel %vm2428, %v2429, %v2427
    %v2431 = vrsqrt.pop %v2353
    %v2432 = vmul.f32 %v2353, %v2431
    %vm2433 = vcmp.eq.f32.partialorder %v2353, inf
    %v2434 = vsel %vm2433, %v2353, %v2432
    %vm2435 = vcmp.eq.f32.partialorder %v2353, 0.0
    %v2436 = vand.u32 %v2353, 2147483648
    %v2437 = vsel %vm2435, %v2436, %v2434
    %vm2438 = vcmask 130048
    %v2439 = vsel %vm2438, %v2360, 0.0
    %v2440 = vsel %vm2438, %v2367, 0.0
    %v2441 = vadd.f32 %v2439, %v2440
    %v2442 = vsel %vm2438, %v2374, 0.0
    %v2443 = vadd.f32 %v2441, %v2442
    %v2444 = vsel %vm2438, %v2381, 0.0
    %v2445 = vadd.f32 %v2443, %v2444
    %v2446 = vsel %vm2438, %v2388, 0.0
    %v2447 = vadd.f32 %v2445, %v2446
    %v2448 = vsel %vm2438, %v2395, 0.0
    %v2449 = vadd.f32 %v2447, %v2448
    %v2450 = vsel %vm2438, %v2402, 0.0
    %v2451 = vadd.f32 %v2449, %v2450
    %v2452 = vsel %vm2438, %v2409, 0.0
    %v2453 = vadd.f32 %v2451, %v2452
    %v2454 = vsel %vm2438, %v2416, 0.0
    %v2455 = vadd.f32 %v2453, %v2454
    %v2456 = vsel %vm2438, %v2423, 0.0
    %v2457 = vadd.f32 %v2455, %v2456
    %v2458 = vsel %vm2438, %v2430, 0.0
    %v2459 = vadd.f32 %v2457, %v2458
    %v2460 = vsel %vm2438, %v2437, 0.0
    %v2461 = vadd.f32 %v2459, %v2460
    %v2462 = vrot.slane %v2461, 4
    %v2463 = vadd.f32 %v2461, %v2462
    %v2464 = vrot.slane %v2463, 2
    %v2465 = vadd.f32 %v2463, %v2464
    %v2466 = vrot.slane %v2465, 1
    %v2467 = vadd.f32 %v2465, %v2466
    %vm2468 = vcmask 122880
    %2469 = vst.msk [vmem:[%s2] sm:$0x1] %vm2468, %v2467
    // Predicated region
    $region18: #{laplacian_loss.1} parent=1 // pred_check
      _
    $region19: #{laplacian_loss.1} parent=1 // pred_check_branch
      %2471 = sbr.rel (0) target = $region21
    $region20: #{laplacian_loss.1} parent=1 // pred_region
      _
    $region21: #{laplacian_loss.1} parent=1 // pred_fallthru
      _
    // Predicated region
    $region22: #{laplacian_loss.1} parent=1 // pred_check
      _
    $region23: #{laplacian_loss.1} parent=1 // pred_check_branch
      %2473 = sbr.rel (0) target = $region25
    $region24: #{laplacian_loss.1} parent=1 // pred_region
      _
    $region25: #{laplacian_loss.1} parent=1 // pred_fallthru
      _
    %2474 = vsyncpa [#allocation3], 1
    %2475 = vsyncpa [#allocation5], 1

</llo_original>
